<compile_context>
chip_gen: v6e
topology: v6e:2x2x1
jax: 0.10.0
libtpu: 0.0.40
codegen_flags: <defaults>
</compile_context>

<pallas_src>
import functools

import jax
import jax.numpy as jnp
from jax import lax
from jax.experimental import pallas as pl
from jax.experimental.pallas import tpu as pltpu


def _round_up(x, m):
    return ((x + m - 1) // m) * m


def _cdiv(a, b):
    return -(-a // b)


def _vmem_capacity_bytes():
    try:
        return int(pltpu.get_tpu_info().vmem_capacity_bytes)
    except Exception:
        return 64 * 1024 * 1024  # conservative (v7x) fallback


def _make_conv_kernel(kH, kW, Wp, L, LH):
    """Fused tap-accumulation kernel.

    w_ref    : (kH*kW, Cout, Cin)   per-tap weights (VMEM resident)
    xm_ref   : (1, Cin, TH*Wp)      main slab (TH padded-input rows, flat)
    xh_ref   : (1, Cin, THH*Wp)     halo rows below the main slab
    o_ref    : (1, Cout, TH*Wp)     full-resolution output rows (f32)
    slab_ref : (Cin, (TH+THH)*Wp)   scratch: main + halo assembled
    """
    taps = [(kh, kw) for kh in range(kH) for kw in range(kW)]

    def kernel(w_ref, xm_ref, xh_ref, o_ref, slab_ref):
        # Assemble the contiguous flat slab (main rows followed by halo rows).
        slab_ref[:, :L] = xm_ref[0]
        slab_ref[:, L:L + LH] = xh_ref[0]
        acc = None
        for t, (kh, kw) in enumerate(taps):
            off = kh * Wp + kw                     # static flat shift of the tap
            xs = slab_ref[:, off:off + L]          # (Cin, TH*Wp)
            p = jnp.dot(w_ref[t], xs, preferred_element_type=jnp.float32)
            acc = p if acc is None else acc + p
        o_ref[0] = acc

    return kernel


@functools.partial(jax.jit, static_argnames=("stride", "compute_dtype"))
def conv2d_pallas(x_nchw, weight, *, stride=1, compute_dtype=jnp.bfloat16):
    """Equivalent of `Conv(nIn, nOut, kSize, stride).forward(x)` (bias=False).

    x_nchw : (N, Cin, H, W)      float32
    weight : (Cout, Cin, kH, kW) float32 (PyTorch OIHW)
    """
    N, Cin, H, W = x_nchw.shape
    Cout, Cin_w, kH, kW = weight.shape
    assert Cin == Cin_w
    assert kH == kW, "Conv module uses a square kernel (kSize, kSize)"
    pad = (kH - 1) // 2
    s = stride
    isz = jnp.dtype(compute_dtype).itemsize

    # Full-resolution (stride-1) geometry; stride-s output is a subsample of it.
    Hp = H + 2 * pad
    Wp_real = W + 2 * pad
    H1 = Hp - kH + 1                      # stride-1 output rows
    Hout = (H + 2 * pad - kH) // s + 1
    Wout = (W + 2 * pad - kW) // s + 1

    Wp = _round_up(Wp_real, 8)            # lane-friendly row pitch
    KT = kH * kW

    # ---- generation-gated VMEM budget & H-tile sizing ----------------------
    vmem_cap = _vmem_capacity_bytes()
    if vmem_cap >= 96 * 1024 * 1024:      # v5e / v6e (128 MiB physical VMEM)
        budget, vmem_limit = 48 * 1024 * 1024, 96 * 1024 * 1024
    else:                                  # v7x (64 MiB physical VMEM)
        budget, vmem_limit = 24 * 1024 * 1024, 48 * 1024 * 1024

    THH = _round_up(kH, 16)                # halo rows; covers every (kh, kw) shift
    # Per-step VMEM: dbl-buffered main + out blocks, slab scratch, f32 acc temps.
    fixed = 3 * Cin * THH * Wp * isz + 2 * KT * Cout * Cin * isz
    per_row = Wp * (3 * Cin * isz + 4 * Cout * 4)
    TH = max(THH, ((budget - fixed) // max(per_row, 1)) // THH * THH)
    TH = min(TH, _round_up(H1, THH))
    HT = _cdiv(H1, TH)
    TH = _round_up(_cdiv(H1, HT), THH)     # equalize tiles (no oversized padding)
    H1pad = HT * TH
    Hp_pad = max(H1pad + THH, Hp)          # room for the last tile's halo rows

    L = TH * Wp                            # main slab flat length  (mult of 128)
    LH = THH * Wp                          # halo slab flat length  (mult of 128)

    # ---- wrapper glue (single pass over x; no transposes) ------------------
    xpad = jnp.pad(
        x_nchw.astype(compute_dtype),
        ((0, 0), (0, 0), (pad, Hp_pad - H - pad), (pad, Wp - W - pad)))
    xflat = xpad.reshape(N, Cin, Hp_pad * Wp)                    # free reshape

    # weights OIHW -> (kH*kW, Cout, Cin), tap order (kh, kw) matching the kernel
    w_taps = jnp.transpose(weight, (2, 3, 0, 1)).reshape(KT, Cout, Cin)
    w_taps = w_taps.astype(compute_dtype)

    kernel = _make_conv_kernel(kH, kW, Wp, L, LH)
    halo_step = TH // THH

    out_flat = pl.pallas_call(
        kernel,
        out_shape=jax.ShapeDtypeStruct((N, Cout, H1pad * Wp), jnp.float32),
        grid_spec=pltpu.PrefetchScalarGridSpec(
            num_scalar_prefetch=0,
            grid=(N, HT),
            in_specs=[
                # resident per-tap weights (constant block index)
                pl.BlockSpec((KT, Cout, Cin), lambda n, t: (0, 0, 0)),
                # main slab: TH padded-input rows of batch n, flattened
                pl.BlockSpec((1, Cin, L), lambda n, t: (n, 0, t)),
                # halo: THH rows immediately below the main slab
                pl.BlockSpec((1, Cin, LH),
                             lambda n, t: (n, 0, (t + 1) * halo_step)),
            ],
            out_specs=pl.BlockSpec((1, Cout, L), lambda n, t: (n, 0, t)),
            scratch_shapes=[pltpu.VMEM((Cin, L + LH), compute_dtype)],
        ),
        compiler_params=pltpu.CompilerParams(
            dimension_semantics=("parallel", "parallel"),
            vmem_limit_bytes=vmem_limit,
        ),
        cost_estimate=pl.CostEstimate(
            flops=2 * N * H1pad * Wp * Cout * Cin * KT,
            bytes_accessed=(2 * N * Cin * Hp_pad * Wp * isz
                            + N * Cout * H1pad * Wp * 4
                            + KT * Cout * Cin * isz),
            transcendentals=0,
        ),
    )(w_taps, xflat, xflat)

    # (N, Cout, H1pad*Wp) -> (N, Cout, Hout, Wout): slice valid rows/cols and
    # subsample for stride > 1 (stride-s output == stride-1 output at [::s,::s]).
    out_full = out_flat.reshape(N, Cout, H1pad, Wp)
    out = out_full[:, :, :(Hout - 1) * s + 1:s, :(Wout - 1) * s + 1:s]
    return out


def _reference_conv(x_nchw, weight, stride, pad):
    return lax.conv_general_dilated(
        x_nchw, weight,
        window_strides=(stride, stride),
        padding=((pad, pad), (pad, pad)),
        dimension_numbers=("NCHW", "OIHW", "NCHW"),
    )


if __name__ == "__main__":
    # Module config: Conv(nIn=4, nOut=8, kSize=3, stride), bias=False.
    nIn, nOut, kSize = 4, 8, 3
    N, H, W = 2, 16, 16
    pad = (kSize - 1) // 2

    key = jax.random.PRNGKey(0)
    kx, kw_ = jax.random.split(key)
    x = jax.random.normal(kx, (N, nIn, H, W), dtype=jnp.float32)
    bound = 1.0 / (nIn * kSize * kSize) ** 0.5
    weight = jax.random.uniform(kw_, (nOut, nIn, kSize, kSize), jnp.float32,
                                minval=-bound, maxval=bound)

    ok = True
    for stride in (1, 2):
        ref = jax.block_until_ready(_reference_conv(x, weight, stride, pad))
        for cdt, tol in ((jnp.float32, 1e-4), (jnp.bfloat16, 5e-2)):
            out = conv2d_pallas(x, weight, stride=stride, compute_dtype=cdt)
            out = jax.block_until_ready(out)
            if out.shape != ref.shape or not bool(
                    jnp.allclose(out, ref, atol=tol, rtol=tol)):
                ok = False
                err = float(jnp.max(jnp.abs(out - ref))) if out.shape == ref.shape else -1.0
                print(f"MISMATCH stride={stride} compute_dtype={jnp.dtype(cdt).name} "
                      f"shape={out.shape} vs {ref.shape} max_abs_err={err}")

    if ok:
        print("KERNEL_OK")
</pallas_src>

<mosaic_0001>
module attributes {stable_mosaic.version = 11 : i64} {
  func.func @kernel(%arg0: i32, %arg1: i32, %arg2: memref<9x8x4xf32, #tpu.memory_space<vmem>>, %arg3: memref<1x4x384xf32, #tpu.memory_space<vmem>>, %arg4: memref<1x4x384xf32, #tpu.memory_space<vmem>>, %arg5: memref<1x8x384xf32, #tpu.memory_space<vmem>>, %arg6: memref<4x768xf32, #tpu.memory_space<vmem>>) attributes {dimension_semantics = [#tpu.dimension_semantics<parallel>, #tpu.dimension_semantics<parallel>], iteration_bounds = array<i64: 2, 1>, scalar_prefetch = 0 : i64, scratch_operands = 1 : i64, tpu.core_type = #tpu.core_type<tc>, window_params = [{pipeline_mode = #tpu.pipeline_mode<synchronous>, transform_indices = @transform_0, window_bounds = array<i64: 9, 8, 4>}, {transform_indices = @transform_1, window_bounds = array<i64: 1, 4, 384>}, {transform_indices = @transform_2, window_bounds = array<i64: 1, 4, 384>}, {transform_indices = @transform_3, window_bounds = array<i64: 1, 8, 384>}]} {
    %c0 = arith.constant 0 : index
    %c0_0 = arith.constant 0 : index
    %c0_1 = arith.constant 0 : index
    %0 = vector.load %arg3[%c0, %c0_0, %c0_1] : memref<1x4x384xf32, #tpu.memory_space<vmem>>, vector<1x4x384xf32>
    %1 = vector.shape_cast %0 : vector<1x4x384xf32> to vector<4x384xf32>
    %c0_2 = arith.constant 0 : index
    %c0_3 = arith.constant 0 : index
    %2 = vector.load %arg6[%c0_2, %c0_3] : memref<4x768xf32, #tpu.memory_space<vmem>>, vector<4x384xf32>
    tpu.vector_store %arg6[%c0_2, %c0_3], %1 {strides = array<i32>} : memref<4x768xf32, #tpu.memory_space<vmem>>, vector<4x384xf32>,
    %c0_4 = arith.constant 0 : index
    %c0_5 = arith.constant 0 : index
    %c0_6 = arith.constant 0 : index
    %3 = vector.load %arg4[%c0_4, %c0_5, %c0_6] : memref<1x4x384xf32, #tpu.memory_space<vmem>>, vector<1x4x384xf32>
    %4 = vector.shape_cast %3 : vector<1x4x384xf32> to vector<4x384xf32>
    %c0_7 = arith.constant 0 : index
    %c384 = arith.constant 384 : index
    %5 = vector.load %arg6[%c0_7, %c384] : memref<4x768xf32, #tpu.memory_space<vmem>>, vector<4x384xf32>
    tpu.vector_store %arg6[%c0_7, %c384], %4 {strides = array<i32>} : memref<4x768xf32, #tpu.memory_space<vmem>>, vector<4x384xf32>,
    %c0_8 = arith.constant 0 : index
    %c0_9 = arith.constant 0 : index
    %6 = vector.load %arg6[%c0_8, %c0_9] : memref<4x768xf32, #tpu.memory_space<vmem>>, vector<4x384xf32>
    %c0_10 = arith.constant 0 : index
    %c0_11 = arith.constant 0 : index
    %c0_12 = arith.constant 0 : index
    %7 = vector.load %arg2[%c0_10, %c0_11, %c0_12] : memref<9x8x4xf32, #tpu.memory_space<vmem>>, vector<1x8x4xf32>
    %8 = vector.shape_cast %7 : vector<1x8x4xf32> to vector<8x4xf32>
    %cst = arith.constant dense<0.000000e+00> : vector<8x384xf32>
    %9 = tpu.matmul %8, %6, %cst {dimension_numbers = #tpu.dot_dimension_numbers<[1], [0], [0], [1], [0, 0, 1, 1], [], []>} : vector<8x4xf32>, vector<4x384xf32>, vector<8x384xf32> -> vector<8x384xf32>
    %c0_13 = arith.constant 0 : index
    %c1 = arith.constant 1 : index
    %10 = vector.load %arg6[%c0_13, %c1] : memref<4x768xf32, #tpu.memory_space<vmem>>, vector<4x384xf32>
    %c1_14 = arith.constant 1 : index
    %c0_15 = arith.constant 0 : index
    %c0_16 = arith.constant 0 : index
    %11 = vector.load %arg2[%c1_14, %c0_15, %c0_16] : memref<9x8x4xf32, #tpu.memory_space<vmem>>, vector<1x8x4xf32>
    %12 = vector.shape_cast %11 : vector<1x8x4xf32> to vector<8x4xf32>
    %cst_17 = arith.constant dense<0.000000e+00> : vector<8x384xf32>
    %13 = tpu.matmul %12, %10, %cst_17 {dimension_numbers = #tpu.dot_dimension_numbers<[1], [0], [0], [1], [0, 0, 1, 1], [], []>} : vector<8x4xf32>, vector<4x384xf32>, vector<8x384xf32> -> vector<8x384xf32>
    %14 = arith.addf %9, %13 : vector<8x384xf32>
    %c0_18 = arith.constant 0 : index
    %c2 = arith.constant 2 : index
    %15 = vector.load %arg6[%c0_18, %c2] : memref<4x768xf32, #tpu.memory_space<vmem>>, vector<4x384xf32>
    %c2_19 = arith.constant 2 : index
    %c0_20 = arith.constant 0 : index
    %c0_21 = arith.constant 0 : index
    %16 = vector.load %arg2[%c2_19, %c0_20, %c0_21] : memref<9x8x4xf32, #tpu.memory_space<vmem>>, vector<1x8x4xf32>
    %17 = vector.shape_cast %16 : vector<1x8x4xf32> to vector<8x4xf32>
    %cst_22 = arith.constant dense<0.000000e+00> : vector<8x384xf32>
    %18 = tpu.matmul %17, %15, %cst_22 {dimension_numbers = #tpu.dot_dimension_numbers<[1], [0], [0], [1], [0, 0, 1, 1], [], []>} : vector<8x4xf32>, vector<4x384xf32>, vector<8x384xf32> -> vector<8x384xf32>
    %19 = arith.addf %14, %18 : vector<8x384xf32>
    %c0_23 = arith.constant 0 : index
    %c24 = arith.constant 24 : index
    %20 = vector.load %arg6[%c0_23, %c24] : memref<4x768xf32, #tpu.memory_space<vmem>>, vector<4x384xf32>
    %c3 = arith.constant 3 : index
    %c0_24 = arith.constant 0 : index
    %c0_25 = arith.constant 0 : index
    %21 = vector.load %arg2[%c3, %c0_24, %c0_25] : memref<9x8x4xf32, #tpu.memory_space<vmem>>, vector<1x8x4xf32>
    %22 = vector.shape_cast %21 : vector<1x8x4xf32> to vector<8x4xf32>
    %cst_26 = arith.constant dense<0.000000e+00> : vector<8x384xf32>
    %23 = tpu.matmul %22, %20, %cst_26 {dimension_numbers = #tpu.dot_dimension_numbers<[1], [0], [0], [1], [0, 0, 1, 1], [], []>} : vector<8x4xf32>, vector<4x384xf32>, vector<8x384xf32> -> vector<8x384xf32>
    %24 = arith.addf %19, %23 : vector<8x384xf32>
    %c0_27 = arith.constant 0 : index
    %c25 = arith.constant 25 : index
    %25 = vector.load %arg6[%c0_27, %c25] : memref<4x768xf32, #tpu.memory_space<vmem>>, vector<4x384xf32>
    %c4 = arith.constant 4 : index
    %c0_28 = arith.constant 0 : index
    %c0_29 = arith.constant 0 : index
    %26 = vector.load %arg2[%c4, %c0_28, %c0_29] : memref<9x8x4xf32, #tpu.memory_space<vmem>>, vector<1x8x4xf32>
    %27 = vector.shape_cast %26 : vector<1x8x4xf32> to vector<8x4xf32>
    %cst_30 = arith.constant dense<0.000000e+00> : vector<8x384xf32>
    %28 = tpu.matmul %27, %25, %cst_30 {dimension_numbers = #tpu.dot_dimension_numbers<[1], [0], [0], [1], [0, 0, 1, 1], [], []>} : vector<8x4xf32>, vector<4x384xf32>, vector<8x384xf32> -> vector<8x384xf32>
    %29 = arith.addf %24, %28 : vector<8x384xf32>
    %c0_31 = arith.constant 0 : index
    %c26 = arith.constant 26 : index
    %30 = vector.load %arg6[%c0_31, %c26] : memref<4x768xf32, #tpu.memory_space<vmem>>, vector<4x384xf32>
    %c5 = arith.constant 5 : index
    %c0_32 = arith.constant 0 : index
    %c0_33 = arith.constant 0 : index
    %31 = vector.load %arg2[%c5, %c0_32, %c0_33] : memref<9x8x4xf32, #tpu.memory_space<vmem>>, vector<1x8x4xf32>
    %32 = vector.shape_cast %31 : vector<1x8x4xf32> to vector<8x4xf32>
    %cst_34 = arith.constant dense<0.000000e+00> : vector<8x384xf32>
    %33 = tpu.matmul %32, %30, %cst_34 {dimension_numbers = #tpu.dot_dimension_numbers<[1], [0], [0], [1], [0, 0, 1, 1], [], []>} : vector<8x4xf32>, vector<4x384xf32>, vector<8x384xf32> -> vector<8x384xf32>
    %34 = arith.addf %29, %33 : vector<8x384xf32>
    %c0_35 = arith.constant 0 : index
    %c48 = arith.constant 48 : index
    %35 = vector.load %arg6[%c0_35, %c48] : memref<4x768xf32, #tpu.memory_space<vmem>>, vector<4x384xf32>
    %c6 = arith.constant 6 : index
    %c0_36 = arith.constant 0 : index
    %c0_37 = arith.constant 0 : index
    %36 = vector.load %arg2[%c6, %c0_36, %c0_37] : memref<9x8x4xf32, #tpu.memory_space<vmem>>, vector<1x8x4xf32>
    %37 = vector.shape_cast %36 : vector<1x8x4xf32> to vector<8x4xf32>
    %cst_38 = arith.constant dense<0.000000e+00> : vector<8x384xf32>
    %38 = tpu.matmul %37, %35, %cst_38 {dimension_numbers = #tpu.dot_dimension_numbers<[1], [0], [0], [1], [0, 0, 1, 1], [], []>} : vector<8x4xf32>, vector<4x384xf32>, vector<8x384xf32> -> vector<8x384xf32>
    %39 = arith.addf %34, %38 : vector<8x384xf32>
    %c0_39 = arith.constant 0 : index
    %c49 = arith.constant 49 : index
    %40 = vector.load %arg6[%c0_39, %c49] : memref<4x768xf32, #tpu.memory_space<vmem>>, vector<4x384xf32>
    %c7 = arith.constant 7 : index
    %c0_40 = arith.constant 0 : index
    %c0_41 = arith.constant 0 : index
    %41 = vector.load %arg2[%c7, %c0_40, %c0_41] : memref<9x8x4xf32, #tpu.memory_space<vmem>>, vector<1x8x4xf32>
    %42 = vector.shape_cast %41 : vector<1x8x4xf32> to vector<8x4xf32>
    %cst_42 = arith.constant dense<0.000000e+00> : vector<8x384xf32>
    %43 = tpu.matmul %42, %40, %cst_42 {dimension_numbers = #tpu.dot_dimension_numbers<[1], [0], [0], [1], [0, 0, 1, 1], [], []>} : vector<8x4xf32>, vector<4x384xf32>, vector<8x384xf32> -> vector<8x384xf32>
    %44 = arith.addf %39, %43 : vector<8x384xf32>
    %c0_43 = arith.constant 0 : index
    %c50 = arith.constant 50 : index
    %45 = vector.load %arg6[%c0_43, %c50] : memref<4x768xf32, #tpu.memory_space<vmem>>, vector<4x384xf32>
    %c8 = arith.constant 8 : index
    %c0_44 = arith.constant 0 : index
    %c0_45 = arith.constant 0 : index
    %46 = vector.load %arg2[%c8, %c0_44, %c0_45] : memref<9x8x4xf32, #tpu.memory_space<vmem>>, vector<1x8x4xf32>
    %47 = vector.shape_cast %46 : vector<1x8x4xf32> to vector<8x4xf32>
    %cst_46 = arith.constant dense<0.000000e+00> : vector<8x384xf32>
    %48 = tpu.matmul %47, %45, %cst_46 {dimension_numbers = #tpu.dot_dimension_numbers<[1], [0], [0], [1], [0, 0, 1, 1], [], []>} : vector<8x4xf32>, vector<4x384xf32>, vector<8x384xf32> -> vector<8x384xf32>
    %49 = arith.addf %44, %48 : vector<8x384xf32>
    %c0_47 = arith.constant 0 : index
    %c0_48 = arith.constant 0 : index
    %c0_49 = arith.constant 0 : index
    %50 = vector.load %arg5[%c0_47, %c0_48, %c0_49] : memref<1x8x384xf32, #tpu.memory_space<vmem>>, vector<1x8x384xf32>
    %51 = vector.shape_cast %50 : vector<1x8x384xf32> to vector<8x384xf32>
    %52 = vector.shape_cast %49 : vector<8x384xf32> to vector<1x8x384xf32>
    tpu.vector_store %arg5[%c0_47, %c0_48, %c0_49], %52 {strides = array<i32>} : memref<1x8x384xf32, #tpu.memory_space<vmem>>, vector<1x8x384xf32>,
    return
  }
  func.func @transform_0(%arg0: i32, %arg1: i32) -> (i32, i32, i32) {
    %c0_i32 = arith.constant 0 : i32
    %c0_i32_0 = arith.constant 0 : i32
    %c0_i32_1 = arith.constant 0 : i32
    %c0_i32_2 = arith.constant 0 : i32
    return %c0_i32, %c0_i32_0, %c0_i32_1 : i32, i32, i32
  }
  func.func @transform_1(%arg0: i32, %arg1: i32) -> (i32, i32, i32) {
    %c0_i32 = arith.constant 0 : i32
    %c0_i32_0 = arith.constant 0 : i32
    return %arg0, %c0_i32, %arg1 : i32, i32, i32
  }
  func.func @transform_2(%arg0: i32, %arg1: i32) -> (i32, i32, i32) {
    %c1_i32 = arith.constant 1 : i32
    %0 = arith.addi %arg1, %c1_i32 : i32
    %c1_i32_0 = arith.constant 1 : i32
    %1 = arith.muli %0, %c1_i32_0 : i32
    %c0_i32 = arith.constant 0 : i32
    %c0_i32_1 = arith.constant 0 : i32
    return %arg0, %c0_i32, %1 : i32, i32, i32
  }
  func.func @transform_3(%arg0: i32, %arg1: i32) -> (i32, i32, i32) {
    %c0_i32 = arith.constant 0 : i32
    %c0_i32_0 = arith.constant 0 : i32
    return %arg0, %c0_i32, %arg1 : i32, i32, i32
  }
}

</mosaic_0001>

<llo_original>
// kernel: conv2d_pallas.1
$region0: #{conv2d_pallas.1}
  #allocation0 [shape = 'u32[]', space=smem, size = 0x4, offset = 0x4, fixed_abs, tag = 'smem constant byte address 0x4 - core index']
  #allocation1 [shape = 'u32[144,128]{1,0:T(1,128)}', space=vmem, size = 0x12000, scoped, tag = 'internal scratch']
  #allocation2 [shape = 'f32[4,768]{1,0:T(4,128)}', space=vmem, size = 0x3000, scoped, tag = 'scratch operand']
  %s0 = inlined_call_operand.vmem [shape: f32[9,8,4], index: 0, kind: input, shape index: {}]
  %s1 = inlined_call_operand.vmem [shape: f32[2,4,768], index: 1, kind: input, shape index: {}, may-alias: {1,2}]
  %s2 = inlined_call_operand.vmem [shape: f32[2,4,768], index: 2, kind: input, shape index: {}, may-alias: {1,2}]
  %s3 = inlined_call_operand.vmem [shape: f32[2,8,384], index: 3, kind: output, shape index: {}]
  %s4 = sld [smem:[#allocation0]]
  $region45: #{conv2d_pallas.1} parent=0
    _
  %s6 = ssub.s32 1, %s4
  %s7 = scalar_select 0, %s6, %s4
  loop: start=0, step=1, limit=4
  $region2: #{conv2d_pallas.1} parent=0 // loop_pre_header
    _
  $region3: #{conv2d_pallas.1} parent=0 // loop_header
    %s9 = sphi 0, %s13
    %p10 = scmp.ge.s32.totalorder %s9, 4
    %s16 = sphi 0, %s28
    %s17 = sphi 0, %s24
    %s18 = sphi 0, %s16
    %s19 = sphi 0, %s17
    %s20 = sphi 0, %s18
    %s21 = sphi 0, %s19
    %s29 = sphi 0, %s29
    %s31 = sphi 0, %s29
    %s32 = sphi 0, %s31
    %s46 = sphi 0, %s32
    %s54 = sphi 0, %s56
    %s57 = sphi 0, %s54
    %s58 = sphi 0, %s57
    %s74 = sphi 0, %s58
    %s84 = sphi 0, %s86
    %s87 = sphi 0, %s84
    %s88 = sphi 0, %s87
    %s104 = sphi 0, %s88
    %s112 = sphi 0, %s114
    %s115 = sphi 0, %s112
    %s116 = sphi 0, %s115
    %s132 = sphi 0, %s116
  $region4: #{conv2d_pallas.1} parent=0 // loop_header_branch
    %12 = sbr.rel (%p10) target = $region8
  $region5: #{conv2d_pallas.1} parent=0 // loop_body
    %s14 = ssub.s32 %s9, 1
    %s15 = ssub.s32 %s9, 2
    %s22 = sadd.s32 1, %s17
    %p23 = scmp.ge.s32.totalorder %s22, 1
    %s24 = scalar_select %p23, 0, %s22
    %s25 = sadd.s32 1, %s16
    %s26 = scalar_select %p23, %s25, %s16
    %p27 = scmp.ge.s32.totalorder %s26, 2
    %s28 = scalar_select %p27, 0, %s26
    %s30 = sadd.s32 %s29, 1
    %p33 = scmp.eq.s32.totalorder %s9, 1
    %p34 = scmp.ne.s32.totalorder %s29, %s31
    %p35 = scmp.eq.s32.totalorder %s9, 0
    %p36 = por %p34, %p35
    %p37 = scmp.ne.s32.totalorder %s29, %s31
    %p38 = scmp.eq.s32.totalorder %s14, 1
    %p39 = por %p37, %p38
    %p40 = scmp.ne.s32.totalorder %s31, %s32
    %p41 = scmp.eq.s32.totalorder %s14, 0
    %p42 = por %p40, %p41
    %p43 = scmp.ne.s32.totalorder %s31, %s32
    %p44 = scmp.eq.s32.totalorder %s15, 1
    %p45 = por %p43, %p44
    %p47 = scmp.ne.s32.totalorder %s32, %s46
    %p48 = scmp.eq.s32.totalorder %s15, 0
    %p49 = por %p47, %p48
    %s50 = ssub.s32 %s16, %s28
    %s51 = ssub.s32 %s17, %s24
    %s52 = sor.u32 %s50, %s51
    %p53 = scmp.eq.s32.totalorder %s52, 0
    %s55 = sadd.s32 %s54, 1
    %s56 = scalar_select %p53, %s54, %s55
    %p59 = pneg %p53
    %p60 = scmp.eq.s32.totalorder %s9, 1
    %p61 = por %p59, %p60
    %p62 = scmp.ne.s32.totalorder %s54, %s57
    %p63 = scmp.eq.s32.totalorder %s9, 0
    %p64 = por %p62, %p63
    %p65 = scmp.ne.s32.totalorder %s54, %s57
    %p66 = scmp.eq.s32.totalorder %s14, 1
    %p67 = por %p65, %p66
    %p68 = scmp.ne.s32.totalorder %s57, %s58
    %p69 = scmp.eq.s32.totalorder %s14, 0
    %p70 = por %p68, %p69
    %p71 = scmp.ne.s32.totalorder %s57, %s58
    %p72 = scmp.eq.s32.totalorder %s15, 1
    %p73 = por %p71, %p72
    %p75 = scmp.ne.s32.totalorder %s58, %s74
    %p76 = scmp.eq.s32.totalorder %s15, 0
    %p77 = por %p75, %p76
    %s78 = sadd.s32 %s17, 1
    %s79 = sadd.s32 %s24, 1
    %s80 = ssub.s32 %s16, %s28
    %s81 = ssub.s32 %s78, %s79
    %s82 = sor.u32 %s80, %s81
    %p83 = scmp.eq.s32.totalorder %s82, 0
    %s85 = sadd.s32 %s84, 1
    %s86 = scalar_select %p83, %s84, %s85
    %p89 = pneg %p83
    %p90 = scmp.eq.s32.totalorder %s9, 1
    %p91 = por %p89, %p90
    %p92 = scmp.ne.s32.totalorder %s84, %s87
    %p93 = scmp.eq.s32.totalorder %s9, 0
    %p94 = por %p92, %p93
    %p95 = scmp.ne.s32.totalorder %s84, %s87
    %p96 = scmp.eq.s32.totalorder %s14, 1
    %p97 = por %p95, %p96
    %p98 = scmp.ne.s32.totalorder %s87, %s88
    %p99 = scmp.eq.s32.totalorder %s14, 0
    %p100 = por %p98, %p99
    %p101 = scmp.ne.s32.totalorder %s87, %s88
    %p102 = scmp.eq.s32.totalorder %s15, 1
    %p103 = por %p101, %p102
    %p105 = scmp.ne.s32.totalorder %s88, %s104
    %p106 = scmp.eq.s32.totalorder %s15, 0
    %p107 = por %p105, %p106
    %s108 = ssub.s32 %s16, %s28
    %s109 = ssub.s32 %s17, %s24
    %s110 = sor.u32 %s108, %s109
    %p111 = scmp.eq.s32.totalorder %s110, 0
    %s113 = sadd.s32 %s112, 1
    %s114 = scalar_select %p111, %s112, %s113
    %p117 = pneg %p111
    %p118 = scmp.eq.s32.totalorder %s9, 1
    %p119 = por %p117, %p118
    %p120 = scmp.ne.s32.totalorder %s112, %s115
    %p121 = scmp.eq.s32.totalorder %s9, 0
    %p122 = por %p120, %p121
    %p123 = scmp.ne.s32.totalorder %s112, %s115
    %p124 = scmp.eq.s32.totalorder %s14, 1
    %p125 = por %p123, %p124
    %p126 = scmp.ne.s32.totalorder %s115, %s116
    %p127 = scmp.eq.s32.totalorder %s14, 0
    %p128 = por %p126, %p127
    %p129 = scmp.ne.s32.totalorder %s115, %s116
    %p130 = scmp.eq.s32.totalorder %s15, 1
    %p131 = por %p129, %p130
    %p133 = scmp.ne.s32.totalorder %s116, %s132
    %p134 = scmp.eq.s32.totalorder %s15, 0
    %p135 = por %p133, %p134
    %p136 = scmp.le.s32.totalorder 1, %s9
    %p137 = scmp.lt.s32.totalorder %s9, 3
    %p138 = pnand %p136, %p137
    %p139 = pneg %p138
    // Predicated region
    $region9: #{conv2d_pallas.1} parent=5 // pred_check
      _
    $region10: #{conv2d_pallas.1} parent=5 // pred_check_branch
      %141 = sbr.rel (%p138) target = $region12
    $region11: #{conv2d_pallas.1} parent=5 // pred_region
      %s142 = ssub.s32 %s9, 1
      // Predicated region
      $region13: #{conv2d_pallas.1} parent=11 // pred_check
        %p143 = pneg %p42
      $region14: #{conv2d_pallas.1} parent=11 // pred_check_branch
        %145 = sbr.rel (%p143) target = $region16
      $region15: #{conv2d_pallas.1} parent=11 // pred_region
        _
      $region16: #{conv2d_pallas.1} parent=11 // pred_fallthru
        _
    $region12: #{conv2d_pallas.1} parent=5 // pred_fallthru
      _
    %p146 = scmp.lt.s32.totalorder %s9, 2
    // Predicated region
    $region17: #{conv2d_pallas.1} parent=5 // pred_check
      %p147 = pneg %p146
    $region18: #{conv2d_pallas.1} parent=5 // pred_check_branch
      %149 = sbr.rel (%p147) target = $region20
    $region19: #{conv2d_pallas.1} parent=5 // pred_region
      // Predicated region
      $region21: #{conv2d_pallas.1} parent=19 // pred_check
        %p150 = pneg %p64
      $region22: #{conv2d_pallas.1} parent=19 // pred_check_branch
        %152 = sbr.rel (%p150) target = $region24
      $region23: #{conv2d_pallas.1} parent=19 // pred_region
        %s153 = smul.u32 3, %s17
        %p154 = scmp.lt.s32.totalorder %s16, 1
        %s155 = scalar_select %p154, %s16, 1
        %p156 = scmp.lt.s32.totalorder %s153, 5
        %s157 = scalar_select %p156, %s153, 5
        %s158 = smul.addr %s155, 6
        %s159 = sadd.s32 %s157, %s158
        %s160 = smul.addr %s159, 4
        %s161 = scalar_lea.vmem %s1, %s160
        %s162 = smul.u32 3, %s17
      $region24: #{conv2d_pallas.1} parent=19 // pred_fallthru
        _
      // Predicated region
      $region25: #{conv2d_pallas.1} parent=19 // pred_check
        %p163 = pneg %p94
      $region26: #{conv2d_pallas.1} parent=19 // pred_check_branch
        %165 = sbr.rel (%p163) target = $region28
      $region27: #{conv2d_pallas.1} parent=19 // pred_region
        %s166 = sadd.s32 %s17, 1
        %s167 = smul.u32 3, %s166
        %p168 = scmp.lt.s32.totalorder %s16, 1
        %s169 = scalar_select %p168, %s16, 1
        %p170 = scmp.lt.s32.totalorder %s167, 5
        %s171 = scalar_select %p170, %s167, 5
        %s172 = smul.addr %s169, 6
        %s173 = sadd.s32 %s171, %s172
        %s174 = smul.addr %s173, 4
        %s175 = scalar_lea.vmem %s2, %s174
        %s176 = sadd.s32 %s17, 1
        %s177 = smul.u32 3, %s176
      $region28: #{conv2d_pallas.1} parent=19 // pred_fallthru
        _
    $region20: #{conv2d_pallas.1} parent=5 // pred_fallthru
      _
    %p178 = scmp.le.s32.totalorder 1, %s9
    %p179 = scmp.lt.s32.totalorder %s9, 3
    %p180 = pnand %p178, %p179
    %p181 = pneg %p180
    // Predicated region
    $region29: #{conv2d_pallas.1} parent=5 // pred_check
      _
    $region30: #{conv2d_pallas.1} parent=5 // pred_check_branch
      %183 = sbr.rel (%p180) target = $region32
    $region31: #{conv2d_pallas.1} parent=5 // pred_region
      %s184 = ssub.s32 %s9, 1
      %p185 = pneg %p42
      %p186 = pneg %p39
      %s187 = smul.u32 3, %s19
      %p188 = scmp.lt.s32.totalorder %s18, 1
      %s189 = scalar_select %p188, %s18, 1
      %p190 = scmp.lt.s32.totalorder %s187, 5
      %s191 = scalar_select %p190, %s187, 5
      %s192 = smul.addr %s189, 6
      %s193 = sadd.s32 %s191, %s192
      %s194 = smul.addr %s193, 4
      %s195 = scalar_lea.vmem %s1, %s194
      %p196 = pneg %p70
      %p197 = pneg %p67
      %s198 = sadd.s32 %s19, 1
      %s199 = smul.u32 3, %s198
      %p200 = scmp.lt.s32.totalorder %s18, 1
      %s201 = scalar_select %p200, %s18, 1
      %p202 = scmp.lt.s32.totalorder %s199, 5
      %s203 = scalar_select %p202, %s199, 5
      %s204 = smul.addr %s201, 6
      %s205 = sadd.s32 %s203, %s204
      %s206 = smul.addr %s205, 4
      %s207 = scalar_lea.vmem %s2, %s206
      %p208 = pneg %p100
      %p209 = pneg %p97
      %p210 = pneg %p128
      %p211 = pneg %p125
      %s212 = smul.u32 3, %s19
      %p213 = scmp.lt.s32.totalorder %s18, 1
      %s214 = scalar_select %p213, %s18, 1
      %p215 = scmp.lt.s32.totalorder %s212, 2
      %s216 = scalar_select %p215, %s212, 2
      %s217 = smul.addr %s214, 3
      %s218 = sadd.s32 %s216, %s217
      %s219 = smul.addr %s218, 8
      %s220 = scalar_lea.vmem %s3, %s219
      %s221 = smul.u32 3, %s19
      %p222 = scmp.lt.s32.totalorder %s18, 1
      %s223 = scalar_select %p222, %s18, 1
      %p224 = scmp.lt.s32.totalorder %s221, 5
      %s225 = scalar_select %p224, %s221, 5
      %s226 = smul.addr %s223, 6
      %s227 = sadd.s32 %s225, %s226
      %s228 = smul.addr %s227, 4
      %s229 = scalar_lea.vmem %s1, %s228
      %s230 = smul.u32 3, %s19
      %s231 = sadd.s32 %s19, 1
      %s232 = smul.u32 3, %s231
      %p233 = scmp.lt.s32.totalorder %s18, 1
      %s234 = scalar_select %p233, %s18, 1
      %p235 = scmp.lt.s32.totalorder %s232, 5
      %s236 = scalar_select %p235, %s232, 5
      %s237 = smul.addr %s234, 6
      %s238 = sadd.s32 %s236, %s237
      %s239 = smul.addr %s238, 4
      %s240 = scalar_lea.vmem %s2, %s239
      %s241 = sadd.s32 %s19, 1
      %s242 = smul.u32 3, %s241
      %s243 = smul.u32 3, %s19
      %p244 = scmp.lt.s32.totalorder %s18, 1
      %s245 = scalar_select %p244, %s18, 1
      %p246 = scmp.lt.s32.totalorder %s243, 2
      %s247 = scalar_select %p246, %s243, 2
      %s248 = smul.addr %s245, 3
      %s249 = sadd.s32 %s247, %s248
      %s250 = smul.addr %s249, 8
      %s251 = scalar_lea.vmem %s3, %s250
      %s252 = smul.u32 3, %s19
      %v253 = vld [vmem:[%s229] sm:$0xff]
      %v254 = vld [vmem:[%s229 + $0x8] sm:$0xf]
      %255 = vst [vmem:[#allocation2] sm:$0xff] %v253
      %256 = vst [vmem:[#allocation2 + $0x8] sm:$0xf] %v254
      %v257 = vld [vmem:[%s240] sm:$0xff]
      %v258 = vld [vmem:[%s240 + $0x8] sm:$0xf]
      %259 = vst [vmem:[#allocation2 + $0xc] sm:$0xff] %v257
      %260 = vst [vmem:[#allocation2 + $0x14] sm:$0xf] %v258
      %v261 = vld [vmem:[#allocation2] sm:$0xff]
      %v262 = vld [vmem:[#allocation2 + $0x8] sm:$0xf]
      %v263 = vld [vmem:[%s0] sm:$0xff]
      %v264 = vld [vmem:[#allocation2 + $0x8] sm:$0xff]
      %s265 = scalar_lea.vmem %s0, 8
      %v266 = vld [vmem:[%s265] sm:$0xff]
      %v269 = vcombine.high %v261, %v261
      %v270 = vcombine.high %v264, %v264
      %271 = vrot.lane.b32.xlu0 %v261, 127
      %v272 = vpop.permute.xlu0 %271
      %273 = vrot.lane.b32.xlu0 %v269, 127
      %v274 = vpop.permute.xlu0 %273
      %275 = vrot.lane.b32.xlu0 %v264, 127
      %v276 = vpop.permute.xlu0 %275
      %277 = vrot.lane.b32.xlu0 %v270, 127
      %v278 = vpop.permute.xlu0 %277
      %vm279 = vcmask 1039360
      %v280 = vsel %vm279, %v272, %v274
      %v281 = vsel %vm279, %v274, %v276
      %v282 = vsel %vm279, %v276, %v278
      %vm283 = vcmask 31744
      %v285 = vsel %vm283, %v266, 0
      %vm287 = vcmask 1043456
      %v288 = vsel %vm287, %v280, 0
      %v290 = vsel %vm287, %v281, 0
      %v292 = vsel %vm287, %v282, 0
      %294 = vmatprep.subr.mxu0 0.0
      %295 = vmatpush1.msra.mxu0 0.0
      %296 = vmatprep.subr.mxu0 0.0
      %297 = vmatpush1.msra.mxu0 0.0
      %298 = vmatprep.subr.mxu0 0.0
      %299 = vmatpush1.msra.mxu0 0.0
      %300 = vmatprep.subr.mxu0 0.0
      %301 = vmatpush1.msra.mxu0 0.0
      %302 = vmatprep.subr.mxu0 0.0
      %303 = vmatpush1.msra.mxu0 0.0
      %304 = vmatprep.subr.mxu0 0.0
      %305 = vmatpush1.msra.mxu0 0.0
      %306 = vmatprep.subr.mxu0 0.0
      %307 = vmatpush1.msra.mxu0 0.0
      %308 = vmatprep.subr.mxu0 0.0
      %309 = vmatpush1.msra.mxu0 0.0
      %310 = vmatprep.subr.mxu0 0.0
      %311 = vmatpush1.msra.mxu0 0.0
      %312 = vmatprep.subr.mxu0 0.0
      %313 = vmatpush1.msra.mxu0 0.0
      %314 = vmatprep.subr.mxu0 0.0
      %315 = vmatpush1.msra.mxu0 0.0
      %316 = vmatprep.subr.mxu0 0.0
      %317 = vmatpush1.msra.mxu0 0.0
      %318 = vmatprep.subr.mxu0 0.0
      %319 = vmatpush1.msra.mxu0 0.0
      %320 = vmatprep.subr.mxu0 0.0
      %321 = vmatpush1.msra.mxu0 0.0
      %322 = vmatprep.subr.mxu0 0.0
      %323 = vmatpush1.msra.mxu0 0.0
      %324 = vmatprep.subr.mxu0 %v290
      %325 = vmatpush1.msra.mxu0 %v288
      %326 = vmatprep.subr.mxu0 0.0
      %327 = vmatpush2.msra.mxu0 0.0
      %328 = vmatprep.subr.mxu0 0.0
      %329 = vmatpush2.msra.mxu0 0.0
      %330 = vmatprep.subr.mxu0 0.0
      %331 = vmatpush2.msra.mxu0 0.0
      %332 = vmatprep.subr.mxu0 0.0
      %333 = vmatpush2.msra.mxu0 0.0
      %334 = vmatprep.subr.mxu0 0.0
      %335 = vmatpush2.msra.mxu0 0.0
      %336 = vmatprep.subr.mxu0 0.0
      %337 = vmatpush2.msra.mxu0 0.0
      %338 = vmatprep.subr.mxu0 0.0
      %339 = vmatpush2.msra.mxu0 0.0
      %340 = vmatprep.subr.mxu0 0.0
      %341 = vmatpush2.msra.mxu0 0.0
      %342 = vmatprep.subr.mxu0 0.0
      %343 = vmatpush2.msra.mxu0 0.0
      %344 = vmatprep.subr.mxu0 0.0
      %345 = vmatpush2.msra.mxu0 0.0
      %346 = vmatprep.subr.mxu0 0.0
      %347 = vmatpush2.msra.mxu0 0.0
      %348 = vmatprep.subr.mxu0 0.0
      %349 = vmatpush2.msra.mxu0 0.0
      %350 = vmatprep.subr.mxu0 0.0
      %351 = vmatpush2.msra.mxu0 0.0
      %352 = vmatprep.subr.mxu0 0.0
      %353 = vmatpush2.msra.mxu0 0.0
      %354 = vmatprep.subr.mxu0 0.0
      %355 = vmatpush2.msra.mxu0 0.0
      %356 = vmatprep.subr.mxu0 0.0
      %357 = vmatpush2.msra.mxu0 0.0
      %358 = vmatprep.mubr.f32.mxu0 0.0
      %359 = vmatmul.mubr.f32.gmra.mxu0 %v285
      %v360 = vpop.f32.mrf.mxu0
      %v361 = vadd.f32 0.0, %v360
      %v362 = vpop.f32.mrf.mxu0
      %v363 = vadd.f32 0.0, %v362
      %364 = vdwg.mxu0
      %365 = vmatprep.subr.mxu0 0.0
      %366 = vmatpush1.msra.mxu0 0.0
      %367 = vmatprep.subr.mxu0 0.0
      %368 = vmatpush1.msra.mxu0 0.0
      %369 = vmatprep.subr.mxu0 0.0
      %370 = vmatpush1.msra.mxu0 0.0
      %371 = vmatprep.subr.mxu0 0.0
      %372 = vmatpush1.msra.mxu0 0.0
      %373 = vmatprep.subr.mxu0 0.0
      %374 = vmatpush1.msra.mxu0 0.0
      %375 = vmatprep.subr.mxu0 0.0
      %376 = vmatpush1.msra.mxu0 0.0
      %377 = vmatprep.subr.mxu0 0.0
      %378 = vmatpush1.msra.mxu0 0.0
      %379 = vmatprep.subr.mxu0 0.0
      %380 = vmatpush1.msra.mxu0 0.0
      %381 = vmatprep.subr.mxu0 0.0
      %382 = vmatpush1.msra.mxu0 0.0
      %383 = vmatprep.subr.mxu0 0.0
      %384 = vmatpush1.msra.mxu0 0.0
      %385 = vmatprep.subr.mxu0 0.0
      %386 = vmatpush1.msra.mxu0 0.0
      %387 = vmatprep.subr.mxu0 0.0
      %388 = vmatpush1.msra.mxu0 0.0
      %389 = vmatprep.subr.mxu0 0.0
      %390 = vmatpush1.msra.mxu0 0.0
      %391 = vmatprep.subr.mxu0 0.0
      %392 = vmatpush1.msra.mxu0 0.0
      %393 = vmatprep.subr.mxu0 0.0
      %394 = vmatpush1.msra.mxu0 0.0
      %395 = vmatprep.subr.mxu0 0.0
      %396 = vmatpush1.msra.mxu0 %v292
      %397 = vmatprep.subr.mxu0 0.0
      %398 = vmatpush2.msra.mxu0 0.0
      %399 = vmatprep.subr.mxu0 0.0
      %400 = vmatpush2.msra.mxu0 0.0
      %401 = vmatprep.subr.mxu0 0.0
      %402 = vmatpush2.msra.mxu0 0.0
      %403 = vmatprep.subr.mxu0 0.0
      %404 = vmatpush2.msra.mxu0 0.0
      %405 = vmatprep.subr.mxu0 0.0
      %406 = vmatpush2.msra.mxu0 0.0
      %407 = vmatprep.subr.mxu0 0.0
      %408 = vmatpush2.msra.mxu0 0.0
      %409 = vmatprep.subr.mxu0 0.0
      %410 = vmatpush2.msra.mxu0 0.0
      %411 = vmatprep.subr.mxu0 0.0
      %412 = vmatpush2.msra.mxu0 0.0
      %413 = vmatprep.subr.mxu0 0.0
      %414 = vmatpush2.msra.mxu0 0.0
      %415 = vmatprep.subr.mxu0 0.0
      %416 = vmatpush2.msra.mxu0 0.0
      %417 = vmatprep.subr.mxu0 0.0
      %418 = vmatpush2.msra.mxu0 0.0
      %419 = vmatprep.subr.mxu0 0.0
      %420 = vmatpush2.msra.mxu0 0.0
      %421 = vmatprep.subr.mxu0 0.0
      %422 = vmatpush2.msra.mxu0 0.0
      %423 = vmatprep.subr.mxu0 0.0
      %424 = vmatpush2.msra.mxu0 0.0
      %425 = vmatprep.subr.mxu0 0.0
      %426 = vmatpush2.msra.mxu0 0.0
      %427 = vmatprep.subr.mxu0 0.0
      %428 = vmatpush2.msra.mxu0 0.0
      %429 = vmatprep.mubr.f32.mxu0 0.0
      %430 = vmatmul.mubr.f32.gmra.mxu0 %v285
      %v431 = vpop.f32.mrf.mxu0
      %v432 = vadd.f32 0.0, %v431
      %v433 = vpop.f32.mrf.mxu0
      %434 = vdwg.mxu0
      %v437 = vsel %vm283, %v263, 0
      %v439 = vsel %vm287, %v261, 0
      %v441 = vsel %vm287, %v269, 0
      %v443 = vsel %vm287, %v262, 0
      %445 = vmatprep.subr.mxu0 0.0
      %446 = vmatpush1.msra.mxu0 0.0
      %447 = vmatprep.subr.mxu0 0.0
      %448 = vmatpush1.msra.mxu0 0.0
      %449 = vmatprep.subr.mxu0 0.0
      %450 = vmatpush1.msra.mxu0 0.0
      %451 = vmatprep.subr.mxu0 0.0
      %452 = vmatpush1.msra.mxu0 0.0
      %453 = vmatprep.subr.mxu0 0.0
      %454 = vmatpush1.msra.mxu0 0.0
      %455 = vmatprep.subr.mxu0 0.0
      %456 = vmatpush1.msra.mxu0 0.0
      %457 = vmatprep.subr.mxu0 0.0
      %458 = vmatpush1.msra.mxu0 0.0
      %459 = vmatprep.subr.mxu0 0.0
      %460 = vmatpush1.msra.mxu0 0.0
      %461 = vmatprep.subr.mxu0 0.0
      %462 = vmatpush1.msra.mxu0 0.0
      %463 = vmatprep.subr.mxu0 0.0
      %464 = vmatpush1.msra.mxu0 0.0
      %465 = vmatprep.subr.mxu0 0.0
      %466 = vmatpush1.msra.mxu0 0.0
      %467 = vmatprep.subr.mxu0 0.0
      %468 = vmatpush1.msra.mxu0 0.0
      %469 = vmatprep.subr.mxu0 0.0
      %470 = vmatpush1.msra.mxu0 0.0
      %471 = vmatprep.subr.mxu0 0.0
      %472 = vmatpush1.msra.mxu0 0.0
      %473 = vmatprep.subr.mxu0 0.0
      %474 = vmatpush1.msra.mxu0 0.0
      %475 = vmatprep.subr.mxu0 %v441
      %476 = vmatpush1.msra.mxu0 %v439
      %477 = vmatprep.subr.mxu0 0.0
      %478 = vmatpush2.msra.mxu0 0.0
      %479 = vmatprep.subr.mxu0 0.0
      %480 = vmatpush2.msra.mxu0 0.0
      %481 = vmatprep.subr.mxu0 0.0
      %482 = vmatpush2.msra.mxu0 0.0
      %483 = vmatprep.subr.mxu0 0.0
      %484 = vmatpush2.msra.mxu0 0.0
      %485 = vmatprep.subr.mxu0 0.0
      %486 = vmatpush2.msra.mxu0 0.0
      %487 = vmatprep.subr.mxu0 0.0
      %488 = vmatpush2.msra.mxu0 0.0
      %489 = vmatprep.subr.mxu0 0.0
      %490 = vmatpush2.msra.mxu0 0.0
      %491 = vmatprep.subr.mxu0 0.0
      %492 = vmatpush2.msra.mxu0 0.0
      %493 = vmatprep.subr.mxu0 0.0
      %494 = vmatpush2.msra.mxu0 0.0
      %495 = vmatprep.subr.mxu0 0.0
      %496 = vmatpush2.msra.mxu0 0.0
      %497 = vmatprep.subr.mxu0 0.0
      %498 = vmatpush2.msra.mxu0 0.0
      %499 = vmatprep.subr.mxu0 0.0
      %500 = vmatpush2.msra.mxu0 0.0
      %501 = vmatprep.subr.mxu0 0.0
      %502 = vmatpush2.msra.mxu0 0.0
      %503 = vmatprep.subr.mxu0 0.0
      %504 = vmatpush2.msra.mxu0 0.0
      %505 = vmatprep.subr.mxu0 0.0
      %506 = vmatpush2.msra.mxu0 0.0
      %507 = vmatprep.subr.mxu0 0.0
      %508 = vmatpush2.msra.mxu0 0.0
      %509 = vmatprep.mubr.f32.mxu0 0.0
      %510 = vmatmul.mubr.f32.gmra.mxu0 %v437
      %v511 = vpop.f32.mrf.mxu0
      %v512 = vadd.f32 %v361, %v511
      %v513 = vpop.f32.mrf.mxu0
      %v514 = vadd.f32 %v363, %v513
      %515 = vdwg.mxu0
      %516 = vmatprep.subr.mxu0 0.0
      %517 = vmatpush1.msra.mxu0 0.0
      %518 = vmatprep.subr.mxu0 0.0
      %519 = vmatpush1.msra.mxu0 0.0
      %520 = vmatprep.subr.mxu0 0.0
      %521 = vmatpush1.msra.mxu0 0.0
      %522 = vmatprep.subr.mxu0 0.0
      %523 = vmatpush1.msra.mxu0 0.0
      %524 = vmatprep.subr.mxu0 0.0
      %525 = vmatpush1.msra.mxu0 0.0
      %526 = vmatprep.subr.mxu0 0.0
      %527 = vmatpush1.msra.mxu0 0.0
      %528 = vmatprep.subr.mxu0 0.0
      %529 = vmatpush1.msra.mxu0 0.0
      %530 = vmatprep.subr.mxu0 0.0
      %531 = vmatpush1.msra.mxu0 0.0
      %532 = vmatprep.subr.mxu0 0.0
      %533 = vmatpush1.msra.mxu0 0.0
      %534 = vmatprep.subr.mxu0 0.0
      %535 = vmatpush1.msra.mxu0 0.0
      %536 = vmatprep.subr.mxu0 0.0
      %537 = vmatpush1.msra.mxu0 0.0
      %538 = vmatprep.subr.mxu0 0.0
      %539 = vmatpush1.msra.mxu0 0.0
      %540 = vmatprep.subr.mxu0 0.0
      %541 = vmatpush1.msra.mxu0 0.0
      %542 = vmatprep.subr.mxu0 0.0
      %543 = vmatpush1.msra.mxu0 0.0
      %544 = vmatprep.subr.mxu0 0.0
      %545 = vmatpush1.msra.mxu0 0.0
      %546 = vmatprep.subr.mxu0 0.0
      %547 = vmatpush1.msra.mxu0 %v443
      %548 = vmatprep.subr.mxu0 0.0
      %549 = vmatpush2.msra.mxu0 0.0
      %550 = vmatprep.subr.mxu0 0.0
      %551 = vmatpush2.msra.mxu0 0.0
      %552 = vmatprep.subr.mxu0 0.0
      %553 = vmatpush2.msra.mxu0 0.0
      %554 = vmatprep.subr.mxu0 0.0
      %555 = vmatpush2.msra.mxu0 0.0
      %556 = vmatprep.subr.mxu0 0.0
      %557 = vmatpush2.msra.mxu0 0.0
      %558 = vmatprep.subr.mxu0 0.0
      %559 = vmatpush2.msra.mxu0 0.0
      %560 = vmatprep.subr.mxu0 0.0
      %561 = vmatpush2.msra.mxu0 0.0
      %562 = vmatprep.subr.mxu0 0.0
      %563 = vmatpush2.msra.mxu0 0.0
      %564 = vmatprep.subr.mxu0 0.0
      %565 = vmatpush2.msra.mxu0 0.0
      %566 = vmatprep.subr.mxu0 0.0
      %567 = vmatpush2.msra.mxu0 0.0
      %568 = vmatprep.subr.mxu0 0.0
      %569 = vmatpush2.msra.mxu0 0.0
      %570 = vmatprep.subr.mxu0 0.0
      %571 = vmatpush2.msra.mxu0 0.0
      %572 = vmatprep.subr.mxu0 0.0
      %573 = vmatpush2.msra.mxu0 0.0
      %574 = vmatprep.subr.mxu0 0.0
      %575 = vmatpush2.msra.mxu0 0.0
      %576 = vmatprep.subr.mxu0 0.0
      %577 = vmatpush2.msra.mxu0 0.0
      %578 = vmatprep.subr.mxu0 0.0
      %579 = vmatpush2.msra.mxu0 0.0
      %580 = vmatprep.mubr.f32.mxu0 0.0
      %581 = vmatmul.mubr.f32.gmra.mxu0 %v437
      %v582 = vpop.f32.mrf.mxu0
      %v583 = vadd.f32 %v432, %v582
      %v584 = vpop.f32.mrf.mxu0
      %585 = vdwg.mxu0
      %v586 = vld [vmem:[#allocation2] sm:$0xff]
      %v587 = vld [vmem:[#allocation2 + $0x8] sm:$0xff]
      %s588 = scalar_lea.vmem %s0, 16
      %v589 = vld [vmem:[%s588] sm:$0xff]
      %v592 = vcombine.high %v586, %v586
      %v593 = vcombine.high %v587, %v587
      %594 = vrot.lane.b32.xlu0 %v586, 126
      %v595 = vpop.permute.xlu0 %594
      %596 = vrot.lane.b32.xlu0 %v592, 126
      %v597 = vpop.permute.xlu0 %596
      %598 = vrot.lane.b32.xlu0 %v587, 126
      %v599 = vpop.permute.xlu0 %598
      %600 = vrot.lane.b32.xlu0 %v593, 126
      %v601 = vpop.permute.xlu0 %600
      %vm602 = vcmask 1031168
      %v603 = vsel %vm602, %v595, %v597
      %v604 = vsel %vm602, %v597, %v599
      %v605 = vsel %vm602, %v599, %v601
      %v607 = vsel %vm283, %v589, 0
      %v609 = vsel %vm287, %v603, 0
      %v611 = vsel %vm287, %v604, 0
      %v613 = vsel %vm287, %v605, 0
      %615 = vmatprep.subr.mxu0 0.0
      %616 = vmatpush1.msra.mxu0 0.0
      %617 = vmatprep.subr.mxu0 0.0
      %618 = vmatpush1.msra.mxu0 0.0
      %619 = vmatprep.subr.mxu0 0.0
      %620 = vmatpush1.msra.mxu0 0.0
      %621 = vmatprep.subr.mxu0 0.0
      %622 = vmatpush1.msra.mxu0 0.0
      %623 = vmatprep.subr.mxu0 0.0
      %624 = vmatpush1.msra.mxu0 0.0
      %625 = vmatprep.subr.mxu0 0.0
      %626 = vmatpush1.msra.mxu0 0.0
      %627 = vmatprep.subr.mxu0 0.0
      %628 = vmatpush1.msra.mxu0 0.0
      %629 = vmatprep.subr.mxu0 0.0
      %630 = vmatpush1.msra.mxu0 0.0
      %631 = vmatprep.subr.mxu0 0.0
      %632 = vmatpush1.msra.mxu0 0.0
      %633 = vmatprep.subr.mxu0 0.0
      %634 = vmatpush1.msra.mxu0 0.0
      %635 = vmatprep.subr.mxu0 0.0
      %636 = vmatpush1.msra.mxu0 0.0
      %637 = vmatprep.subr.mxu0 0.0
      %638 = vmatpush1.msra.mxu0 0.0
      %639 = vmatprep.subr.mxu0 0.0
      %640 = vmatpush1.msra.mxu0 0.0
      %641 = vmatprep.subr.mxu0 0.0
      %642 = vmatpush1.msra.mxu0 0.0
      %643 = vmatprep.subr.mxu0 0.0
      %644 = vmatpush1.msra.mxu0 0.0
      %645 = vmatprep.subr.mxu0 %v611
      %646 = vmatpush1.msra.mxu0 %v609
      %647 = vmatprep.subr.mxu0 0.0
      %648 = vmatpush2.msra.mxu0 0.0
      %649 = vmatprep.subr.mxu0 0.0
      %650 = vmatpush2.msra.mxu0 0.0
      %651 = vmatprep.subr.mxu0 0.0
      %652 = vmatpush2.msra.mxu0 0.0
      %653 = vmatprep.subr.mxu0 0.0
      %654 = vmatpush2.msra.mxu0 0.0
      %655 = vmatprep.subr.mxu0 0.0
      %656 = vmatpush2.msra.mxu0 0.0
      %657 = vmatprep.subr.mxu0 0.0
      %658 = vmatpush2.msra.mxu0 0.0
      %659 = vmatprep.subr.mxu0 0.0
      %660 = vmatpush2.msra.mxu0 0.0
      %661 = vmatprep.subr.mxu0 0.0
      %662 = vmatpush2.msra.mxu0 0.0
      %663 = vmatprep.subr.mxu0 0.0
      %664 = vmatpush2.msra.mxu0 0.0
      %665 = vmatprep.subr.mxu0 0.0
      %666 = vmatpush2.msra.mxu0 0.0
      %667 = vmatprep.subr.mxu0 0.0
      %668 = vmatpush2.msra.mxu0 0.0
      %669 = vmatprep.subr.mxu0 0.0
      %670 = vmatpush2.msra.mxu0 0.0
      %671 = vmatprep.subr.mxu0 0.0
      %672 = vmatpush2.msra.mxu0 0.0
      %673 = vmatprep.subr.mxu0 0.0
      %674 = vmatpush2.msra.mxu0 0.0
      %675 = vmatprep.subr.mxu0 0.0
      %676 = vmatpush2.msra.mxu0 0.0
      %677 = vmatprep.subr.mxu0 0.0
      %678 = vmatpush2.msra.mxu0 0.0
      %679 = vmatprep.mubr.f32.mxu0 0.0
      %680 = vmatmul.mubr.f32.gmra.mxu0 %v607
      %v681 = vpop.f32.mrf.mxu0
      %v682 = vadd.f32 0.0, %v681
      %v683 = vpop.f32.mrf.mxu0
      %v684 = vadd.f32 0.0, %v683
      %685 = vdwg.mxu0
      %686 = vmatprep.subr.mxu0 0.0
      %687 = vmatpush1.msra.mxu0 0.0
      %688 = vmatprep.subr.mxu0 0.0
      %689 = vmatpush1.msra.mxu0 0.0
      %690 = vmatprep.subr.mxu0 0.0
      %691 = vmatpush1.msra.mxu0 0.0
      %692 = vmatprep.subr.mxu0 0.0
      %693 = vmatpush1.msra.mxu0 0.0
      %694 = vmatprep.subr.mxu0 0.0
      %695 = vmatpush1.msra.mxu0 0.0
      %696 = vmatprep.subr.mxu0 0.0
      %697 = vmatpush1.msra.mxu0 0.0
      %698 = vmatprep.subr.mxu0 0.0
      %699 = vmatpush1.msra.mxu0 0.0
      %700 = vmatprep.subr.mxu0 0.0
      %701 = vmatpush1.msra.mxu0 0.0
      %702 = vmatprep.subr.mxu0 0.0
      %703 = vmatpush1.msra.mxu0 0.0
      %704 = vmatprep.subr.mxu0 0.0
      %705 = vmatpush1.msra.mxu0 0.0
      %706 = vmatprep.subr.mxu0 0.0
      %707 = vmatpush1.msra.mxu0 0.0
      %708 = vmatprep.subr.mxu0 0.0
      %709 = vmatpush1.msra.mxu0 0.0
      %710 = vmatprep.subr.mxu0 0.0
      %711 = vmatpush1.msra.mxu0 0.0
      %712 = vmatprep.subr.mxu0 0.0
      %713 = vmatpush1.msra.mxu0 0.0
      %714 = vmatprep.subr.mxu0 0.0
      %715 = vmatpush1.msra.mxu0 0.0
      %716 = vmatprep.subr.mxu0 0.0
      %717 = vmatpush1.msra.mxu0 %v613
      %718 = vmatprep.subr.mxu0 0.0
      %719 = vmatpush2.msra.mxu0 0.0
      %720 = vmatprep.subr.mxu0 0.0
      %721 = vmatpush2.msra.mxu0 0.0
      %722 = vmatprep.subr.mxu0 0.0
      %723 = vmatpush2.msra.mxu0 0.0
      %724 = vmatprep.subr.mxu0 0.0
      %725 = vmatpush2.msra.mxu0 0.0
      %726 = vmatprep.subr.mxu0 0.0
      %727 = vmatpush2.msra.mxu0 0.0
      %728 = vmatprep.subr.mxu0 0.0
      %729 = vmatpush2.msra.mxu0 0.0
      %730 = vmatprep.subr.mxu0 0.0
      %731 = vmatpush2.msra.mxu0 0.0
      %732 = vmatprep.subr.mxu0 0.0
      %733 = vmatpush2.msra.mxu0 0.0
      %734 = vmatprep.subr.mxu0 0.0
      %735 = vmatpush2.msra.mxu0 0.0
      %736 = vmatprep.subr.mxu0 0.0
      %737 = vmatpush2.msra.mxu0 0.0
      %738 = vmatprep.subr.mxu0 0.0
      %739 = vmatpush2.msra.mxu0 0.0
      %740 = vmatprep.subr.mxu0 0.0
      %741 = vmatpush2.msra.mxu0 0.0
      %742 = vmatprep.subr.mxu0 0.0
      %743 = vmatpush2.msra.mxu0 0.0
      %744 = vmatprep.subr.mxu0 0.0
      %745 = vmatpush2.msra.mxu0 0.0
      %746 = vmatprep.subr.mxu0 0.0
      %747 = vmatpush2.msra.mxu0 0.0
      %748 = vmatprep.subr.mxu0 0.0
      %749 = vmatpush2.msra.mxu0 0.0
      %750 = vmatprep.mubr.f32.mxu0 0.0
      %751 = vmatmul.mubr.f32.gmra.mxu0 %v607
      %v752 = vpop.f32.mrf.mxu0
      %v753 = vadd.f32 0.0, %v752
      %v754 = vpop.f32.mrf.mxu0
      %755 = vdwg.mxu0
      %v756 = vadd.f32 %v512, %v682
      %v757 = vadd.f32 %v514, %v684
      %v758 = vadd.f32 %v583, %v753
      %v759 = vld [vmem:[#allocation2] sm:$0xff]
      %v760 = vld [vmem:[#allocation2 + $0x8] sm:$0xff]
      %s761 = scalar_lea.vmem %s0, 24
      %v762 = vld [vmem:[%s761] sm:$0xff]
      %v765 = vcombine.high %v759, %v759
      %v766 = vcombine.high %v760, %v760
      %767 = vrot.lane.b32.xlu0 %v759, 104
      %v768 = vpop.permute.xlu0 %767
      %769 = vrot.lane.b32.xlu0 %v765, 104
      %v770 = vpop.permute.xlu0 %769
      %771 = vrot.lane.b32.xlu0 %v760, 104
      %v772 = vpop.permute.xlu0 %771
      %773 = vrot.lane.b32.xlu0 %v766, 104
      %v774 = vpop.permute.xlu0 %773
      %vm775 = vcmask 850944
      %v776 = vsel %vm775, %v768, %v770
      %v777 = vsel %vm775, %v770, %v772
      %v778 = vsel %vm775, %v772, %v774
      %v780 = vsel %vm283, %v762, 0
      %v782 = vsel %vm287, %v776, 0
      %v784 = vsel %vm287, %v777, 0
      %v786 = vsel %vm287, %v778, 0
      %788 = vmatprep.subr.mxu0 0.0
      %789 = vmatpush1.msra.mxu0 0.0
      %790 = vmatprep.subr.mxu0 0.0
      %791 = vmatpush1.msra.mxu0 0.0
      %792 = vmatprep.subr.mxu0 0.0
      %793 = vmatpush1.msra.mxu0 0.0
      %794 = vmatprep.subr.mxu0 0.0
      %795 = vmatpush1.msra.mxu0 0.0
      %796 = vmatprep.subr.mxu0 0.0
      %797 = vmatpush1.msra.mxu0 0.0
      %798 = vmatprep.subr.mxu0 0.0
      %799 = vmatpush1.msra.mxu0 0.0
      %800 = vmatprep.subr.mxu0 0.0
      %801 = vmatpush1.msra.mxu0 0.0
      %802 = vmatprep.subr.mxu0 0.0
      %803 = vmatpush1.msra.mxu0 0.0
      %804 = vmatprep.subr.mxu0 0.0
      %805 = vmatpush1.msra.mxu0 0.0
      %806 = vmatprep.subr.mxu0 0.0
      %807 = vmatpush1.msra.mxu0 0.0
      %808 = vmatprep.subr.mxu0 0.0
      %809 = vmatpush1.msra.mxu0 0.0
      %810 = vmatprep.subr.mxu0 0.0
      %811 = vmatpush1.msra.mxu0 0.0
      %812 = vmatprep.subr.mxu0 0.0
      %813 = vmatpush1.msra.mxu0 0.0
      %814 = vmatprep.subr.mxu0 0.0
      %815 = vmatpush1.msra.mxu0 0.0
      %816 = vmatprep.subr.mxu0 0.0
      %817 = vmatpush1.msra.mxu0 0.0
      %818 = vmatprep.subr.mxu0 %v784
      %819 = vmatpush1.msra.mxu0 %v782
      %820 = vmatprep.subr.mxu0 0.0
      %821 = vmatpush2.msra.mxu0 0.0
      %822 = vmatprep.subr.mxu0 0.0
      %823 = vmatpush2.msra.mxu0 0.0
      %824 = vmatprep.subr.mxu0 0.0
      %825 = vmatpush2.msra.mxu0 0.0
      %826 = vmatprep.subr.mxu0 0.0
      %827 = vmatpush2.msra.mxu0 0.0
      %828 = vmatprep.subr.mxu0 0.0
      %829 = vmatpush2.msra.mxu0 0.0
      %830 = vmatprep.subr.mxu0 0.0
      %831 = vmatpush2.msra.mxu0 0.0
      %832 = vmatprep.subr.mxu0 0.0
      %833 = vmatpush2.msra.mxu0 0.0
      %834 = vmatprep.subr.mxu0 0.0
      %835 = vmatpush2.msra.mxu0 0.0
      %836 = vmatprep.subr.mxu0 0.0
      %837 = vmatpush2.msra.mxu0 0.0
      %838 = vmatprep.subr.mxu0 0.0
      %839 = vmatpush2.msra.mxu0 0.0
      %840 = vmatprep.subr.mxu0 0.0
      %841 = vmatpush2.msra.mxu0 0.0
      %842 = vmatprep.subr.mxu0 0.0
      %843 = vmatpush2.msra.mxu0 0.0
      %844 = vmatprep.subr.mxu0 0.0
      %845 = vmatpush2.msra.mxu0 0.0
      %846 = vmatprep.subr.mxu0 0.0
      %847 = vmatpush2.msra.mxu0 0.0
      %848 = vmatprep.subr.mxu0 0.0
      %849 = vmatpush2.msra.mxu0 0.0
      %850 = vmatprep.subr.mxu0 0.0
      %851 = vmatpush2.msra.mxu0 0.0
      %852 = vmatprep.mubr.f32.mxu0 0.0
      %853 = vmatmul.mubr.f32.gmra.mxu0 %v780
      %v854 = vpop.f32.mrf.mxu0
      %v855 = vadd.f32 0.0, %v854
      %v856 = vpop.f32.mrf.mxu0
      %v857 = vadd.f32 0.0, %v856
      %858 = vdwg.mxu0
      %859 = vmatprep.subr.mxu0 0.0
      %860 = vmatpush1.msra.mxu0 0.0
      %861 = vmatprep.subr.mxu0 0.0
      %862 = vmatpush1.msra.mxu0 0.0
      %863 = vmatprep.subr.mxu0 0.0
      %864 = vmatpush1.msra.mxu0 0.0
      %865 = vmatprep.subr.mxu0 0.0
      %866 = vmatpush1.msra.mxu0 0.0
      %867 = vmatprep.subr.mxu0 0.0
      %868 = vmatpush1.msra.mxu0 0.0
      %869 = vmatprep.subr.mxu0 0.0
      %870 = vmatpush1.msra.mxu0 0.0
      %871 = vmatprep.subr.mxu0 0.0
      %872 = vmatpush1.msra.mxu0 0.0
      %873 = vmatprep.subr.mxu0 0.0
      %874 = vmatpush1.msra.mxu0 0.0
      %875 = vmatprep.subr.mxu0 0.0
      %876 = vmatpush1.msra.mxu0 0.0
      %877 = vmatprep.subr.mxu0 0.0
      %878 = vmatpush1.msra.mxu0 0.0
      %879 = vmatprep.subr.mxu0 0.0
      %880 = vmatpush1.msra.mxu0 0.0
      %881 = vmatprep.subr.mxu0 0.0
      %882 = vmatpush1.msra.mxu0 0.0
      %883 = vmatprep.subr.mxu0 0.0
      %884 = vmatpush1.msra.mxu0 0.0
      %885 = vmatprep.subr.mxu0 0.0
      %886 = vmatpush1.msra.mxu0 0.0
      %887 = vmatprep.subr.mxu0 0.0
      %888 = vmatpush1.msra.mxu0 0.0
      %889 = vmatprep.subr.mxu0 0.0
      %890 = vmatpush1.msra.mxu0 %v786
      %891 = vmatprep.subr.mxu0 0.0
      %892 = vmatpush2.msra.mxu0 0.0
      %893 = vmatprep.subr.mxu0 0.0
      %894 = vmatpush2.msra.mxu0 0.0
      %895 = vmatprep.subr.mxu0 0.0
      %896 = vmatpush2.msra.mxu0 0.0
      %897 = vmatprep.subr.mxu0 0.0
      %898 = vmatpush2.msra.mxu0 0.0
      %899 = vmatprep.subr.mxu0 0.0
      %900 = vmatpush2.msra.mxu0 0.0
      %901 = vmatprep.subr.mxu0 0.0
      %902 = vmatpush2.msra.mxu0 0.0
      %903 = vmatprep.subr.mxu0 0.0
      %904 = vmatpush2.msra.mxu0 0.0
      %905 = vmatprep.subr.mxu0 0.0
      %906 = vmatpush2.msra.mxu0 0.0
      %907 = vmatprep.subr.mxu0 0.0
      %908 = vmatpush2.msra.mxu0 0.0
      %909 = vmatprep.subr.mxu0 0.0
      %910 = vmatpush2.msra.mxu0 0.0
      %911 = vmatprep.subr.mxu0 0.0
      %912 = vmatpush2.msra.mxu0 0.0
      %913 = vmatprep.subr.mxu0 0.0
      %914 = vmatpush2.msra.mxu0 0.0
      %915 = vmatprep.subr.mxu0 0.0
      %916 = vmatpush2.msra.mxu0 0.0
      %917 = vmatprep.subr.mxu0 0.0
      %918 = vmatpush2.msra.mxu0 0.0
      %919 = vmatprep.subr.mxu0 0.0
      %920 = vmatpush2.msra.mxu0 0.0
      %921 = vmatprep.subr.mxu0 0.0
      %922 = vmatpush2.msra.mxu0 0.0
      %923 = vmatprep.mubr.f32.mxu0 0.0
      %924 = vmatmul.mubr.f32.gmra.mxu0 %v780
      %v925 = vpop.f32.mrf.mxu0
      %v926 = vadd.f32 0.0, %v925
      %v927 = vpop.f32.mrf.mxu0
      %928 = vdwg.mxu0
      %v929 = vadd.f32 %v756, %v855
      %v930 = vadd.f32 %v757, %v857
      %v931 = vadd.f32 %v758, %v926
      %v932 = vld [vmem:[#allocation2] sm:$0xff]
      %v933 = vld [vmem:[#allocation2 + $0x8] sm:$0xff]
      %s934 = scalar_lea.vmem %s0, 32
      %v935 = vld [vmem:[%s934] sm:$0xff]
      %v938 = vcombine.high %v932, %v932
      %v939 = vcombine.high %v933, %v933
      %940 = vrot.lane.b32.xlu0 %v932, 103
      %v941 = vpop.permute.xlu0 %940
      %942 = vrot.lane.b32.xlu0 %v938, 103
      %v943 = vpop.permute.xlu0 %942
      %944 = vrot.lane.b32.xlu0 %v933, 103
      %v945 = vpop.permute.xlu0 %944
      %946 = vrot.lane.b32.xlu0 %v939, 103
      %v947 = vpop.permute.xlu0 %946
      %vm948 = vcmask 842752
      %v949 = vsel %vm948, %v941, %v943
      %v950 = vsel %vm948, %v943, %v945
      %v951 = vsel %vm948, %v945, %v947
      %v953 = vsel %vm283, %v935, 0
      %v955 = vsel %vm287, %v949, 0
      %v957 = vsel %vm287, %v950, 0
      %v959 = vsel %vm287, %v951, 0
      %961 = vmatprep.subr.mxu0 0.0
      %962 = vmatpush1.msra.mxu0 0.0
      %963 = vmatprep.subr.mxu0 0.0
      %964 = vmatpush1.msra.mxu0 0.0
      %965 = vmatprep.subr.mxu0 0.0
      %966 = vmatpush1.msra.mxu0 0.0
      %967 = vmatprep.subr.mxu0 0.0
      %968 = vmatpush1.msra.mxu0 0.0
      %969 = vmatprep.subr.mxu0 0.0
      %970 = vmatpush1.msra.mxu0 0.0
      %971 = vmatprep.subr.mxu0 0.0
      %972 = vmatpush1.msra.mxu0 0.0
      %973 = vmatprep.subr.mxu0 0.0
      %974 = vmatpush1.msra.mxu0 0.0
      %975 = vmatprep.subr.mxu0 0.0
      %976 = vmatpush1.msra.mxu0 0.0
      %977 = vmatprep.subr.mxu0 0.0
      %978 = vmatpush1.msra.mxu0 0.0
      %979 = vmatprep.subr.mxu0 0.0
      %980 = vmatpush1.msra.mxu0 0.0
      %981 = vmatprep.subr.mxu0 0.0
      %982 = vmatpush1.msra.mxu0 0.0
      %983 = vmatprep.subr.mxu0 0.0
      %984 = vmatpush1.msra.mxu0 0.0
      %985 = vmatprep.subr.mxu0 0.0
      %986 = vmatpush1.msra.mxu0 0.0
      %987 = vmatprep.subr.mxu0 0.0
      %988 = vmatpush1.msra.mxu0 0.0
      %989 = vmatprep.subr.mxu0 0.0
      %990 = vmatpush1.msra.mxu0 0.0
      %991 = vmatprep.subr.mxu0 %v957
      %992 = vmatpush1.msra.mxu0 %v955
      %993 = vmatprep.subr.mxu0 0.0
      %994 = vmatpush2.msra.mxu0 0.0
      %995 = vmatprep.subr.mxu0 0.0
      %996 = vmatpush2.msra.mxu0 0.0
      %997 = vmatprep.subr.mxu0 0.0
      %998 = vmatpush2.msra.mxu0 0.0
      %999 = vmatprep.subr.mxu0 0.0
      %1000 = vmatpush2.msra.mxu0 0.0
      %1001 = vmatprep.subr.mxu0 0.0
      %1002 = vmatpush2.msra.mxu0 0.0
      %1003 = vmatprep.subr.mxu0 0.0
      %1004 = vmatpush2.msra.mxu0 0.0
      %1005 = vmatprep.subr.mxu0 0.0
      %1006 = vmatpush2.msra.mxu0 0.0
      %1007 = vmatprep.subr.mxu0 0.0
      %1008 = vmatpush2.msra.mxu0 0.0
      %1009 = vmatprep.subr.mxu0 0.0
      %1010 = vmatpush2.msra.mxu0 0.0
      %1011 = vmatprep.subr.mxu0 0.0
      %1012 = vmatpush2.msra.mxu0 0.0
      %1013 = vmatprep.subr.mxu0 0.0
      %1014 = vmatpush2.msra.mxu0 0.0
      %1015 = vmatprep.subr.mxu0 0.0
      %1016 = vmatpush2.msra.mxu0 0.0
      %1017 = vmatprep.subr.mxu0 0.0
      %1018 = vmatpush2.msra.mxu0 0.0
      %1019 = vmatprep.subr.mxu0 0.0
      %1020 = vmatpush2.msra.mxu0 0.0
      %1021 = vmatprep.subr.mxu0 0.0
      %1022 = vmatpush2.msra.mxu0 0.0
      %1023 = vmatprep.subr.mxu0 0.0
      %1024 = vmatpush2.msra.mxu0 0.0
      %1025 = vmatprep.mubr.f32.mxu0 0.0
      %1026 = vmatmul.mubr.f32.gmra.mxu0 %v953
      %v1027 = vpop.f32.mrf.mxu0
      %v1028 = vadd.f32 0.0, %v1027
      %v1029 = vpop.f32.mrf.mxu0
      %v1030 = vadd.f32 0.0, %v1029
      %1031 = vdwg.mxu0
      %1032 = vmatprep.subr.mxu0 0.0
      %1033 = vmatpush1.msra.mxu0 0.0
      %1034 = vmatprep.subr.mxu0 0.0
      %1035 = vmatpush1.msra.mxu0 0.0
      %1036 = vmatprep.subr.mxu0 0.0
      %1037 = vmatpush1.msra.mxu0 0.0
      %1038 = vmatprep.subr.mxu0 0.0
      %1039 = vmatpush1.msra.mxu0 0.0
      %1040 = vmatprep.subr.mxu0 0.0
      %1041 = vmatpush1.msra.mxu0 0.0
      %1042 = vmatprep.subr.mxu0 0.0
      %1043 = vmatpush1.msra.mxu0 0.0
      %1044 = vmatprep.subr.mxu0 0.0
      %1045 = vmatpush1.msra.mxu0 0.0
      %1046 = vmatprep.subr.mxu0 0.0
      %1047 = vmatpush1.msra.mxu0 0.0
      %1048 = vmatprep.subr.mxu0 0.0
      %1049 = vmatpush1.msra.mxu0 0.0
      %1050 = vmatprep.subr.mxu0 0.0
      %1051 = vmatpush1.msra.mxu0 0.0
      %1052 = vmatprep.subr.mxu0 0.0
      %1053 = vmatpush1.msra.mxu0 0.0
      %1054 = vmatprep.subr.mxu0 0.0
      %1055 = vmatpush1.msra.mxu0 0.0
      %1056 = vmatprep.subr.mxu0 0.0
      %1057 = vmatpush1.msra.mxu0 0.0
      %1058 = vmatprep.subr.mxu0 0.0
      %1059 = vmatpush1.msra.mxu0 0.0
      %1060 = vmatprep.subr.mxu0 0.0
      %1061 = vmatpush1.msra.mxu0 0.0
      %1062 = vmatprep.subr.mxu0 0.0
      %1063 = vmatpush1.msra.mxu0 %v959
      %1064 = vmatprep.subr.mxu0 0.0
      %1065 = vmatpush2.msra.mxu0 0.0
      %1066 = vmatprep.subr.mxu0 0.0
      %1067 = vmatpush2.msra.mxu0 0.0
      %1068 = vmatprep.subr.mxu0 0.0
      %1069 = vmatpush2.msra.mxu0 0.0
      %1070 = vmatprep.subr.mxu0 0.0
      %1071 = vmatpush2.msra.mxu0 0.0
      %1072 = vmatprep.subr.mxu0 0.0
      %1073 = vmatpush2.msra.mxu0 0.0
      %1074 = vmatprep.subr.mxu0 0.0
      %1075 = vmatpush2.msra.mxu0 0.0
      %1076 = vmatprep.subr.mxu0 0.0
      %1077 = vmatpush2.msra.mxu0 0.0
      %1078 = vmatprep.subr.mxu0 0.0
      %1079 = vmatpush2.msra.mxu0 0.0
      %1080 = vmatprep.subr.mxu0 0.0
      %1081 = vmatpush2.msra.mxu0 0.0
      %1082 = vmatprep.subr.mxu0 0.0
      %1083 = vmatpush2.msra.mxu0 0.0
      %1084 = vmatprep.subr.mxu0 0.0
      %1085 = vmatpush2.msra.mxu0 0.0
      %1086 = vmatprep.subr.mxu0 0.0
      %1087 = vmatpush2.msra.mxu0 0.0
      %1088 = vmatprep.subr.mxu0 0.0
      %1089 = vmatpush2.msra.mxu0 0.0
      %1090 = vmatprep.subr.mxu0 0.0
      %1091 = vmatpush2.msra.mxu0 0.0
      %1092 = vmatprep.subr.mxu0 0.0
      %1093 = vmatpush2.msra.mxu0 0.0
      %1094 = vmatprep.subr.mxu0 0.0
      %1095 = vmatpush2.msra.mxu0 0.0
      %1096 = vmatprep.mubr.f32.mxu0 0.0
      %1097 = vmatmul.mubr.f32.gmra.mxu0 %v953
      %v1098 = vpop.f32.mrf.mxu0
      %v1099 = vadd.f32 0.0, %v1098
      %v1100 = vpop.f32.mrf.mxu0
      %1101 = vdwg.mxu0
      %v1102 = vadd.f32 %v929, %v1028
      %v1103 = vadd.f32 %v930, %v1030
      %v1104 = vadd.f32 %v931, %v1099
      %v1105 = vld [vmem:[#allocation2] sm:$0xff]
      %v1106 = vld [vmem:[#allocation2 + $0x8] sm:$0xff]
      %s1107 = scalar_lea.vmem %s0, 40
      %v1108 = vld [vmem:[%s1107] sm:$0xff]
      %v1111 = vcombine.high %v1105, %v1105
      %v1112 = vcombine.high %v1106, %v1106
      %1113 = vrot.lane.b32.xlu0 %v1105, 102
      %v1114 = vpop.permute.xlu0 %1113
      %1115 = vrot.lane.b32.xlu0 %v1111, 102
      %v1116 = vpop.permute.xlu0 %1115
      %1117 = vrot.lane.b32.xlu0 %v1106, 102
      %v1118 = vpop.permute.xlu0 %1117
      %1119 = vrot.lane.b32.xlu0 %v1112, 102
      %v1120 = vpop.permute.xlu0 %1119
      %vm1121 = vcmask 834560
      %v1122 = vsel %vm1121, %v1114, %v1116
      %v1123 = vsel %vm1121, %v1116, %v1118
      %v1124 = vsel %vm1121, %v1118, %v1120
      %v1126 = vsel %vm283, %v1108, 0
      %v1128 = vsel %vm287, %v1122, 0
      %v1130 = vsel %vm287, %v1123, 0
      %v1132 = vsel %vm287, %v1124, 0
      %1134 = vmatprep.subr.mxu0 0.0
      %1135 = vmatpush1.msra.mxu0 0.0
      %1136 = vmatprep.subr.mxu0 0.0
      %1137 = vmatpush1.msra.mxu0 0.0
      %1138 = vmatprep.subr.mxu0 0.0
      %1139 = vmatpush1.msra.mxu0 0.0
      %1140 = vmatprep.subr.mxu0 0.0
      %1141 = vmatpush1.msra.mxu0 0.0
      %1142 = vmatprep.subr.mxu0 0.0
      %1143 = vmatpush1.msra.mxu0 0.0
      %1144 = vmatprep.subr.mxu0 0.0
      %1145 = vmatpush1.msra.mxu0 0.0
      %1146 = vmatprep.subr.mxu0 0.0
      %1147 = vmatpush1.msra.mxu0 0.0
      %1148 = vmatprep.subr.mxu0 0.0
      %1149 = vmatpush1.msra.mxu0 0.0
      %1150 = vmatprep.subr.mxu0 0.0
      %1151 = vmatpush1.msra.mxu0 0.0
      %1152 = vmatprep.subr.mxu0 0.0
      %1153 = vmatpush1.msra.mxu0 0.0
      %1154 = vmatprep.subr.mxu0 0.0
      %1155 = vmatpush1.msra.mxu0 0.0
      %1156 = vmatprep.subr.mxu0 0.0
      %1157 = vmatpush1.msra.mxu0 0.0
      %1158 = vmatprep.subr.mxu0 0.0
      %1159 = vmatpush1.msra.mxu0 0.0
      %1160 = vmatprep.subr.mxu0 0.0
      %1161 = vmatpush1.msra.mxu0 0.0
      %1162 = vmatprep.subr.mxu0 0.0
      %1163 = vmatpush1.msra.mxu0 0.0
      %1164 = vmatprep.subr.mxu0 %v1130
      %1165 = vmatpush1.msra.mxu0 %v1128
      %1166 = vmatprep.subr.mxu0 0.0
      %1167 = vmatpush2.msra.mxu0 0.0
      %1168 = vmatprep.subr.mxu0 0.0
      %1169 = vmatpush2.msra.mxu0 0.0
      %1170 = vmatprep.subr.mxu0 0.0
      %1171 = vmatpush2.msra.mxu0 0.0
      %1172 = vmatprep.subr.mxu0 0.0
      %1173 = vmatpush2.msra.mxu0 0.0
      %1174 = vmatprep.subr.mxu0 0.0
      %1175 = vmatpush2.msra.mxu0 0.0
      %1176 = vmatprep.subr.mxu0 0.0
      %1177 = vmatpush2.msra.mxu0 0.0
      %1178 = vmatprep.subr.mxu0 0.0
      %1179 = vmatpush2.msra.mxu0 0.0
      %1180 = vmatprep.subr.mxu0 0.0
      %1181 = vmatpush2.msra.mxu0 0.0
      %1182 = vmatprep.subr.mxu0 0.0
      %1183 = vmatpush2.msra.mxu0 0.0
      %1184 = vmatprep.subr.mxu0 0.0
      %1185 = vmatpush2.msra.mxu0 0.0
      %1186 = vmatprep.subr.mxu0 0.0
      %1187 = vmatpush2.msra.mxu0 0.0
      %1188 = vmatprep.subr.mxu0 0.0
      %1189 = vmatpush2.msra.mxu0 0.0
      %1190 = vmatprep.subr.mxu0 0.0
      %1191 = vmatpush2.msra.mxu0 0.0
      %1192 = vmatprep.subr.mxu0 0.0
      %1193 = vmatpush2.msra.mxu0 0.0
      %1194 = vmatprep.subr.mxu0 0.0
      %1195 = vmatpush2.msra.mxu0 0.0
      %1196 = vmatprep.subr.mxu0 0.0
      %1197 = vmatpush2.msra.mxu0 0.0
      %1198 = vmatprep.mubr.f32.mxu0 0.0
      %1199 = vmatmul.mubr.f32.gmra.mxu0 %v1126
      %v1200 = vpop.f32.mrf.mxu0
      %v1201 = vadd.f32 0.0, %v1200
      %v1202 = vpop.f32.mrf.mxu0
      %v1203 = vadd.f32 0.0, %v1202
      %1204 = vdwg.mxu0
      %1205 = vmatprep.subr.mxu0 0.0
      %1206 = vmatpush1.msra.mxu0 0.0
      %1207 = vmatprep.subr.mxu0 0.0
      %1208 = vmatpush1.msra.mxu0 0.0
      %1209 = vmatprep.subr.mxu0 0.0
      %1210 = vmatpush1.msra.mxu0 0.0
      %1211 = vmatprep.subr.mxu0 0.0
      %1212 = vmatpush1.msra.mxu0 0.0
      %1213 = vmatprep.subr.mxu0 0.0
      %1214 = vmatpush1.msra.mxu0 0.0
      %1215 = vmatprep.subr.mxu0 0.0
      %1216 = vmatpush1.msra.mxu0 0.0
      %1217 = vmatprep.subr.mxu0 0.0
      %1218 = vmatpush1.msra.mxu0 0.0
      %1219 = vmatprep.subr.mxu0 0.0
      %1220 = vmatpush1.msra.mxu0 0.0
      %1221 = vmatprep.subr.mxu0 0.0
      %1222 = vmatpush1.msra.mxu0 0.0
      %1223 = vmatprep.subr.mxu0 0.0
      %1224 = vmatpush1.msra.mxu0 0.0
      %1225 = vmatprep.subr.mxu0 0.0
      %1226 = vmatpush1.msra.mxu0 0.0
      %1227 = vmatprep.subr.mxu0 0.0
      %1228 = vmatpush1.msra.mxu0 0.0
      %1229 = vmatprep.subr.mxu0 0.0
      %1230 = vmatpush1.msra.mxu0 0.0
      %1231 = vmatprep.subr.mxu0 0.0
      %1232 = vmatpush1.msra.mxu0 0.0
      %1233 = vmatprep.subr.mxu0 0.0
      %1234 = vmatpush1.msra.mxu0 0.0
      %1235 = vmatprep.subr.mxu0 0.0
      %1236 = vmatpush1.msra.mxu0 %v1132
      %1237 = vmatprep.subr.mxu0 0.0
      %1238 = vmatpush2.msra.mxu0 0.0
      %1239 = vmatprep.subr.mxu0 0.0
      %1240 = vmatpush2.msra.mxu0 0.0
      %1241 = vmatprep.subr.mxu0 0.0
      %1242 = vmatpush2.msra.mxu0 0.0
      %1243 = vmatprep.subr.mxu0 0.0
      %1244 = vmatpush2.msra.mxu0 0.0
      %1245 = vmatprep.subr.mxu0 0.0
      %1246 = vmatpush2.msra.mxu0 0.0
      %1247 = vmatprep.subr.mxu0 0.0
      %1248 = vmatpush2.msra.mxu0 0.0
      %1249 = vmatprep.subr.mxu0 0.0
      %1250 = vmatpush2.msra.mxu0 0.0
      %1251 = vmatprep.subr.mxu0 0.0
      %1252 = vmatpush2.msra.mxu0 0.0
      %1253 = vmatprep.subr.mxu0 0.0
      %1254 = vmatpush2.msra.mxu0 0.0
      %1255 = vmatprep.subr.mxu0 0.0
      %1256 = vmatpush2.msra.mxu0 0.0
      %1257 = vmatprep.subr.mxu0 0.0
      %1258 = vmatpush2.msra.mxu0 0.0
      %1259 = vmatprep.subr.mxu0 0.0
      %1260 = vmatpush2.msra.mxu0 0.0
      %1261 = vmatprep.subr.mxu0 0.0
      %1262 = vmatpush2.msra.mxu0 0.0
      %1263 = vmatprep.subr.mxu0 0.0
      %1264 = vmatpush2.msra.mxu0 0.0
      %1265 = vmatprep.subr.mxu0 0.0
      %1266 = vmatpush2.msra.mxu0 0.0
      %1267 = vmatprep.subr.mxu0 0.0
      %1268 = vmatpush2.msra.mxu0 0.0
      %1269 = vmatprep.mubr.f32.mxu0 0.0
      %1270 = vmatmul.mubr.f32.gmra.mxu0 %v1126
      %v1271 = vpop.f32.mrf.mxu0
      %v1272 = vadd.f32 0.0, %v1271
      %v1273 = vpop.f32.mrf.mxu0
      %1274 = vdwg.mxu0
      %v1275 = vadd.f32 %v1102, %v1201
      %v1276 = vadd.f32 %v1103, %v1203
      %v1277 = vadd.f32 %v1104, %v1272
      %v1278 = vld [vmem:[#allocation2] sm:$0xff]
      %v1279 = vld [vmem:[#allocation2 + $0x8] sm:$0xff]
      %s1280 = scalar_lea.vmem %s0, 48
      %v1281 = vld [vmem:[%s1280] sm:$0xff]
      %v1284 = vcombine.high %v1278, %v1278
      %v1285 = vcombine.high %v1279, %v1279
      %1286 = vrot.lane.b32.xlu0 %v1278, 80
      %v1287 = vpop.permute.xlu0 %1286
      %1288 = vrot.lane.b32.xlu0 %v1284, 80
      %v1289 = vpop.permute.xlu0 %1288
      %1290 = vrot.lane.b32.xlu0 %v1279, 80
      %v1291 = vpop.permute.xlu0 %1290
      %1292 = vrot.lane.b32.xlu0 %v1285, 80
      %v1293 = vpop.permute.xlu0 %1292
      %vm1294 = vcmask 654336
      %v1295 = vsel %vm1294, %v1287, %v1289
      %v1296 = vsel %vm1294, %v1289, %v1291
      %v1297 = vsel %vm1294, %v1291, %v1293
      %v1299 = vsel %vm283, %v1281, 0
      %v1301 = vsel %vm287, %v1295, 0
      %v1303 = vsel %vm287, %v1296, 0
      %v1305 = vsel %vm287, %v1297, 0
      %1307 = vmatprep.subr.mxu0 0.0
      %1308 = vmatpush1.msra.mxu0 0.0
      %1309 = vmatprep.subr.mxu0 0.0
      %1310 = vmatpush1.msra.mxu0 0.0
      %1311 = vmatprep.subr.mxu0 0.0
      %1312 = vmatpush1.msra.mxu0 0.0
      %1313 = vmatprep.subr.mxu0 0.0
      %1314 = vmatpush1.msra.mxu0 0.0
      %1315 = vmatprep.subr.mxu0 0.0
      %1316 = vmatpush1.msra.mxu0 0.0
      %1317 = vmatprep.subr.mxu0 0.0
      %1318 = vmatpush1.msra.mxu0 0.0
      %1319 = vmatprep.subr.mxu0 0.0
      %1320 = vmatpush1.msra.mxu0 0.0
      %1321 = vmatprep.subr.mxu0 0.0
      %1322 = vmatpush1.msra.mxu0 0.0
      %1323 = vmatprep.subr.mxu0 0.0
      %1324 = vmatpush1.msra.mxu0 0.0
      %1325 = vmatprep.subr.mxu0 0.0
      %1326 = vmatpush1.msra.mxu0 0.0
      %1327 = vmatprep.subr.mxu0 0.0
      %1328 = vmatpush1.msra.mxu0 0.0
      %1329 = vmatprep.subr.mxu0 0.0
      %1330 = vmatpush1.msra.mxu0 0.0
      %1331 = vmatprep.subr.mxu0 0.0
      %1332 = vmatpush1.msra.mxu0 0.0
      %1333 = vmatprep.subr.mxu0 0.0
      %1334 = vmatpush1.msra.mxu0 0.0
      %1335 = vmatprep.subr.mxu0 0.0
      %1336 = vmatpush1.msra.mxu0 0.0
      %1337 = vmatprep.subr.mxu0 %v1303
      %1338 = vmatpush1.msra.mxu0 %v1301
      %1339 = vmatprep.subr.mxu0 0.0
      %1340 = vmatpush2.msra.mxu0 0.0
      %1341 = vmatprep.subr.mxu0 0.0
      %1342 = vmatpush2.msra.mxu0 0.0
      %1343 = vmatprep.subr.mxu0 0.0
      %1344 = vmatpush2.msra.mxu0 0.0
      %1345 = vmatprep.subr.mxu0 0.0
      %1346 = vmatpush2.msra.mxu0 0.0
      %1347 = vmatprep.subr.mxu0 0.0
      %1348 = vmatpush2.msra.mxu0 0.0
      %1349 = vmatprep.subr.mxu0 0.0
      %1350 = vmatpush2.msra.mxu0 0.0
      %1351 = vmatprep.subr.mxu0 0.0
      %1352 = vmatpush2.msra.mxu0 0.0
      %1353 = vmatprep.subr.mxu0 0.0
      %1354 = vmatpush2.msra.mxu0 0.0
      %1355 = vmatprep.subr.mxu0 0.0
      %1356 = vmatpush2.msra.mxu0 0.0
      %1357 = vmatprep.subr.mxu0 0.0
      %1358 = vmatpush2.msra.mxu0 0.0
      %1359 = vmatprep.subr.mxu0 0.0
      %1360 = vmatpush2.msra.mxu0 0.0
      %1361 = vmatprep.subr.mxu0 0.0
      %1362 = vmatpush2.msra.mxu0 0.0
      %1363 = vmatprep.subr.mxu0 0.0
      %1364 = vmatpush2.msra.mxu0 0.0
      %1365 = vmatprep.subr.mxu0 0.0
      %1366 = vmatpush2.msra.mxu0 0.0
      %1367 = vmatprep.subr.mxu0 0.0
      %1368 = vmatpush2.msra.mxu0 0.0
      %1369 = vmatprep.subr.mxu0 0.0
      %1370 = vmatpush2.msra.mxu0 0.0
      %1371 = vmatprep.mubr.f32.mxu0 0.0
      %1372 = vmatmul.mubr.f32.gmra.mxu0 %v1299
      %v1373 = vpop.f32.mrf.mxu0
      %v1374 = vadd.f32 0.0, %v1373
      %v1375 = vpop.f32.mrf.mxu0
      %v1376 = vadd.f32 0.0, %v1375
      %1377 = vdwg.mxu0
      %1378 = vmatprep.subr.mxu0 0.0
      %1379 = vmatpush1.msra.mxu0 0.0
      %1380 = vmatprep.subr.mxu0 0.0
      %1381 = vmatpush1.msra.mxu0 0.0
      %1382 = vmatprep.subr.mxu0 0.0
      %1383 = vmatpush1.msra.mxu0 0.0
      %1384 = vmatprep.subr.mxu0 0.0
      %1385 = vmatpush1.msra.mxu0 0.0
      %1386 = vmatprep.subr.mxu0 0.0
      %1387 = vmatpush1.msra.mxu0 0.0
      %1388 = vmatprep.subr.mxu0 0.0
      %1389 = vmatpush1.msra.mxu0 0.0
      %1390 = vmatprep.subr.mxu0 0.0
      %1391 = vmatpush1.msra.mxu0 0.0
      %1392 = vmatprep.subr.mxu0 0.0
      %1393 = vmatpush1.msra.mxu0 0.0
      %1394 = vmatprep.subr.mxu0 0.0
      %1395 = vmatpush1.msra.mxu0 0.0
      %1396 = vmatprep.subr.mxu0 0.0
      %1397 = vmatpush1.msra.mxu0 0.0
      %1398 = vmatprep.subr.mxu0 0.0
      %1399 = vmatpush1.msra.mxu0 0.0
      %1400 = vmatprep.subr.mxu0 0.0
      %1401 = vmatpush1.msra.mxu0 0.0
      %1402 = vmatprep.subr.mxu0 0.0
      %1403 = vmatpush1.msra.mxu0 0.0
      %1404 = vmatprep.subr.mxu0 0.0
      %1405 = vmatpush1.msra.mxu0 0.0
      %1406 = vmatprep.subr.mxu0 0.0
      %1407 = vmatpush1.msra.mxu0 0.0
      %1408 = vmatprep.subr.mxu0 0.0
      %1409 = vmatpush1.msra.mxu0 %v1305
      %1410 = vmatprep.subr.mxu0 0.0
      %1411 = vmatpush2.msra.mxu0 0.0
      %1412 = vmatprep.subr.mxu0 0.0
      %1413 = vmatpush2.msra.mxu0 0.0
      %1414 = vmatprep.subr.mxu0 0.0
      %1415 = vmatpush2.msra.mxu0 0.0
      %1416 = vmatprep.subr.mxu0 0.0
      %1417 = vmatpush2.msra.mxu0 0.0
      %1418 = vmatprep.subr.mxu0 0.0
      %1419 = vmatpush2.msra.mxu0 0.0
      %1420 = vmatprep.subr.mxu0 0.0
      %1421 = vmatpush2.msra.mxu0 0.0
      %1422 = vmatprep.subr.mxu0 0.0
      %1423 = vmatpush2.msra.mxu0 0.0
      %1424 = vmatprep.subr.mxu0 0.0
      %1425 = vmatpush2.msra.mxu0 0.0
      %1426 = vmatprep.subr.mxu0 0.0
      %1427 = vmatpush2.msra.mxu0 0.0
      %1428 = vmatprep.subr.mxu0 0.0
      %1429 = vmatpush2.msra.mxu0 0.0
      %1430 = vmatprep.subr.mxu0 0.0
      %1431 = vmatpush2.msra.mxu0 0.0
      %1432 = vmatprep.subr.mxu0 0.0
      %1433 = vmatpush2.msra.mxu0 0.0
      %1434 = vmatprep.subr.mxu0 0.0
      %1435 = vmatpush2.msra.mxu0 0.0
      %1436 = vmatprep.subr.mxu0 0.0
      %1437 = vmatpush2.msra.mxu0 0.0
      %1438 = vmatprep.subr.mxu0 0.0
      %1439 = vmatpush2.msra.mxu0 0.0
      %1440 = vmatprep.subr.mxu0 0.0
      %1441 = vmatpush2.msra.mxu0 0.0
      %1442 = vmatprep.mubr.f32.mxu0 0.0
      %1443 = vmatmul.mubr.f32.gmra.mxu0 %v1299
      %v1444 = vpop.f32.mrf.mxu0
      %v1445 = vadd.f32 0.0, %v1444
      %v1446 = vpop.f32.mrf.mxu0
      %1447 = vdwg.mxu0
      %v1448 = vadd.f32 %v1275, %v1374
      %v1449 = vadd.f32 %v1276, %v1376
      %v1450 = vadd.f32 %v1277, %v1445
      %v1451 = vld [vmem:[#allocation2] sm:$0xff]
      %v1452 = vld [vmem:[#allocation2 + $0x8] sm:$0xff]
      %s1453 = scalar_lea.vmem %s0, 56
      %v1454 = vld [vmem:[%s1453] sm:$0xff]
      %v1457 = vcombine.high %v1451, %v1451
      %v1458 = vcombine.high %v1452, %v1452
      %1459 = vrot.lane.b32.xlu0 %v1451, 79
      %v1460 = vpop.permute.xlu0 %1459
      %1461 = vrot.lane.b32.xlu0 %v1457, 79
      %v1462 = vpop.permute.xlu0 %1461
      %1463 = vrot.lane.b32.xlu0 %v1452, 79
      %v1464 = vpop.permute.xlu0 %1463
      %1465 = vrot.lane.b32.xlu0 %v1458, 79
      %v1466 = vpop.permute.xlu0 %1465
      %vm1467 = vcmask 646144
      %v1468 = vsel %vm1467, %v1460, %v1462
      %v1469 = vsel %vm1467, %v1462, %v1464
      %v1470 = vsel %vm1467, %v1464, %v1466
      %v1472 = vsel %vm283, %v1454, 0
      %v1474 = vsel %vm287, %v1468, 0
      %v1476 = vsel %vm287, %v1469, 0
      %v1478 = vsel %vm287, %v1470, 0
      %1480 = vmatprep.subr.mxu0 0.0
      %1481 = vmatpush1.msra.mxu0 0.0
      %1482 = vmatprep.subr.mxu0 0.0
      %1483 = vmatpush1.msra.mxu0 0.0
      %1484 = vmatprep.subr.mxu0 0.0
      %1485 = vmatpush1.msra.mxu0 0.0
      %1486 = vmatprep.subr.mxu0 0.0
      %1487 = vmatpush1.msra.mxu0 0.0
      %1488 = vmatprep.subr.mxu0 0.0
      %1489 = vmatpush1.msra.mxu0 0.0
      %1490 = vmatprep.subr.mxu0 0.0
      %1491 = vmatpush1.msra.mxu0 0.0
      %1492 = vmatprep.subr.mxu0 0.0
      %1493 = vmatpush1.msra.mxu0 0.0
      %1494 = vmatprep.subr.mxu0 0.0
      %1495 = vmatpush1.msra.mxu0 0.0
      %1496 = vmatprep.subr.mxu0 0.0
      %1497 = vmatpush1.msra.mxu0 0.0
      %1498 = vmatprep.subr.mxu0 0.0
      %1499 = vmatpush1.msra.mxu0 0.0
      %1500 = vmatprep.subr.mxu0 0.0
      %1501 = vmatpush1.msra.mxu0 0.0
      %1502 = vmatprep.subr.mxu0 0.0
      %1503 = vmatpush1.msra.mxu0 0.0
      %1504 = vmatprep.subr.mxu0 0.0
      %1505 = vmatpush1.msra.mxu0 0.0
      %1506 = vmatprep.subr.mxu0 0.0
      %1507 = vmatpush1.msra.mxu0 0.0
      %1508 = vmatprep.subr.mxu0 0.0
      %1509 = vmatpush1.msra.mxu0 0.0
      %1510 = vmatprep.subr.mxu0 %v1476
      %1511 = vmatpush1.msra.mxu0 %v1474
      %1512 = vmatprep.subr.mxu0 0.0
      %1513 = vmatpush2.msra.mxu0 0.0
      %1514 = vmatprep.subr.mxu0 0.0
      %1515 = vmatpush2.msra.mxu0 0.0
      %1516 = vmatprep.subr.mxu0 0.0
      %1517 = vmatpush2.msra.mxu0 0.0
      %1518 = vmatprep.subr.mxu0 0.0
      %1519 = vmatpush2.msra.mxu0 0.0
      %1520 = vmatprep.subr.mxu0 0.0
      %1521 = vmatpush2.msra.mxu0 0.0
      %1522 = vmatprep.subr.mxu0 0.0
      %1523 = vmatpush2.msra.mxu0 0.0
      %1524 = vmatprep.subr.mxu0 0.0
      %1525 = vmatpush2.msra.mxu0 0.0
      %1526 = vmatprep.subr.mxu0 0.0
      %1527 = vmatpush2.msra.mxu0 0.0
      %1528 = vmatprep.subr.mxu0 0.0
      %1529 = vmatpush2.msra.mxu0 0.0
      %1530 = vmatprep.subr.mxu0 0.0
      %1531 = vmatpush2.msra.mxu0 0.0
      %1532 = vmatprep.subr.mxu0 0.0
      %1533 = vmatpush2.msra.mxu0 0.0
      %1534 = vmatprep.subr.mxu0 0.0
      %1535 = vmatpush2.msra.mxu0 0.0
      %1536 = vmatprep.subr.mxu0 0.0
      %1537 = vmatpush2.msra.mxu0 0.0
      %1538 = vmatprep.subr.mxu0 0.0
      %1539 = vmatpush2.msra.mxu0 0.0
      %1540 = vmatprep.subr.mxu0 0.0
      %1541 = vmatpush2.msra.mxu0 0.0
      %1542 = vmatprep.subr.mxu0 0.0
      %1543 = vmatpush2.msra.mxu0 0.0
      %1544 = vmatprep.mubr.f32.mxu0 0.0
      %1545 = vmatmul.mubr.f32.gmra.mxu0 %v1472
      %v1546 = vpop.f32.mrf.mxu0
      %v1547 = vadd.f32 0.0, %v1546
      %v1548 = vpop.f32.mrf.mxu0
      %v1549 = vadd.f32 0.0, %v1548
      %1550 = vdwg.mxu0
      %1551 = vmatprep.subr.mxu0 0.0
      %1552 = vmatpush1.msra.mxu0 0.0
      %1553 = vmatprep.subr.mxu0 0.0
      %1554 = vmatpush1.msra.mxu0 0.0
      %1555 = vmatprep.subr.mxu0 0.0
      %1556 = vmatpush1.msra.mxu0 0.0
      %1557 = vmatprep.subr.mxu0 0.0
      %1558 = vmatpush1.msra.mxu0 0.0
      %1559 = vmatprep.subr.mxu0 0.0
      %1560 = vmatpush1.msra.mxu0 0.0
      %1561 = vmatprep.subr.mxu0 0.0
      %1562 = vmatpush1.msra.mxu0 0.0
      %1563 = vmatprep.subr.mxu0 0.0
      %1564 = vmatpush1.msra.mxu0 0.0
      %1565 = vmatprep.subr.mxu0 0.0
      %1566 = vmatpush1.msra.mxu0 0.0
      %1567 = vmatprep.subr.mxu0 0.0
      %1568 = vmatpush1.msra.mxu0 0.0
      %1569 = vmatprep.subr.mxu0 0.0
      %1570 = vmatpush1.msra.mxu0 0.0
      %1571 = vmatprep.subr.mxu0 0.0
      %1572 = vmatpush1.msra.mxu0 0.0
      %1573 = vmatprep.subr.mxu0 0.0
      %1574 = vmatpush1.msra.mxu0 0.0
      %1575 = vmatprep.subr.mxu0 0.0
      %1576 = vmatpush1.msra.mxu0 0.0
      %1577 = vmatprep.subr.mxu0 0.0
      %1578 = vmatpush1.msra.mxu0 0.0
      %1579 = vmatprep.subr.mxu0 0.0
      %1580 = vmatpush1.msra.mxu0 0.0
      %1581 = vmatprep.subr.mxu0 0.0
      %1582 = vmatpush1.msra.mxu0 %v1478
      %1583 = vmatprep.subr.mxu0 0.0
      %1584 = vmatpush2.msra.mxu0 0.0
      %1585 = vmatprep.subr.mxu0 0.0
      %1586 = vmatpush2.msra.mxu0 0.0
      %1587 = vmatprep.subr.mxu0 0.0
      %1588 = vmatpush2.msra.mxu0 0.0
      %1589 = vmatprep.subr.mxu0 0.0
      %1590 = vmatpush2.msra.mxu0 0.0
      %1591 = vmatprep.subr.mxu0 0.0
      %1592 = vmatpush2.msra.mxu0 0.0
      %1593 = vmatprep.subr.mxu0 0.0
      %1594 = vmatpush2.msra.mxu0 0.0
      %1595 = vmatprep.subr.mxu0 0.0
      %1596 = vmatpush2.msra.mxu0 0.0
      %1597 = vmatprep.subr.mxu0 0.0
      %1598 = vmatpush2.msra.mxu0 0.0
      %1599 = vmatprep.subr.mxu0 0.0
      %1600 = vmatpush2.msra.mxu0 0.0
      %1601 = vmatprep.subr.mxu0 0.0
      %1602 = vmatpush2.msra.mxu0 0.0
      %1603 = vmatprep.subr.mxu0 0.0
      %1604 = vmatpush2.msra.mxu0 0.0
      %1605 = vmatprep.subr.mxu0 0.0
      %1606 = vmatpush2.msra.mxu0 0.0
      %1607 = vmatprep.subr.mxu0 0.0
      %1608 = vmatpush2.msra.mxu0 0.0
      %1609 = vmatprep.subr.mxu0 0.0
      %1610 = vmatpush2.msra.mxu0 0.0
      %1611 = vmatprep.subr.mxu0 0.0
      %1612 = vmatpush2.msra.mxu0 0.0
      %1613 = vmatprep.subr.mxu0 0.0
      %1614 = vmatpush2.msra.mxu0 0.0
      %1615 = vmatprep.mubr.f32.mxu0 0.0
      %1616 = vmatmul.mubr.f32.gmra.mxu0 %v1472
      %v1617 = vpop.f32.mrf.mxu0
      %v1618 = vadd.f32 0.0, %v1617
      %v1619 = vpop.f32.mrf.mxu0
      %1620 = vdwg.mxu0
      %v1621 = vadd.f32 %v1448, %v1547
      %v1622 = vadd.f32 %v1449, %v1549
      %v1623 = vadd.f32 %v1450, %v1618
      %v1624 = vld [vmem:[#allocation2] sm:$0xff]
      %v1625 = vld [vmem:[#allocation2 + $0x8] sm:$0xff]
      %s1626 = scalar_lea.vmem %s0, 64
      %v1627 = vld [vmem:[%s1626] sm:$0xff]
      %v1630 = vcombine.high %v1624, %v1624
      %v1631 = vcombine.high %v1625, %v1625
      %1632 = vrot.lane.b32.xlu0 %v1624, 78
      %v1633 = vpop.permute.xlu0 %1632
      %1634 = vrot.lane.b32.xlu0 %v1630, 78
      %v1635 = vpop.permute.xlu0 %1634
      %1636 = vrot.lane.b32.xlu0 %v1625, 78
      %v1637 = vpop.permute.xlu0 %1636
      %1638 = vrot.lane.b32.xlu0 %v1631, 78
      %v1639 = vpop.permute.xlu0 %1638
      %vm1640 = vcmask 637952
      %v1641 = vsel %vm1640, %v1633, %v1635
      %v1642 = vsel %vm1640, %v1635, %v1637
      %v1643 = vsel %vm1640, %v1637, %v1639
      %v1645 = vsel %vm283, %v1627, 0
      %v1647 = vsel %vm287, %v1641, 0
      %v1649 = vsel %vm287, %v1642, 0
      %v1651 = vsel %vm287, %v1643, 0
      %1653 = vmatprep.subr.mxu0 0.0
      %1654 = vmatpush1.msra.mxu0 0.0
      %1655 = vmatprep.subr.mxu0 0.0
      %1656 = vmatpush1.msra.mxu0 0.0
      %1657 = vmatprep.subr.mxu0 0.0
      %1658 = vmatpush1.msra.mxu0 0.0
      %1659 = vmatprep.subr.mxu0 0.0
      %1660 = vmatpush1.msra.mxu0 0.0
      %1661 = vmatprep.subr.mxu0 0.0
      %1662 = vmatpush1.msra.mxu0 0.0
      %1663 = vmatprep.subr.mxu0 0.0
      %1664 = vmatpush1.msra.mxu0 0.0
      %1665 = vmatprep.subr.mxu0 0.0
      %1666 = vmatpush1.msra.mxu0 0.0
      %1667 = vmatprep.subr.mxu0 0.0
      %1668 = vmatpush1.msra.mxu0 0.0
      %1669 = vmatprep.subr.mxu0 0.0
      %1670 = vmatpush1.msra.mxu0 0.0
      %1671 = vmatprep.subr.mxu0 0.0
      %1672 = vmatpush1.msra.mxu0 0.0
      %1673 = vmatprep.subr.mxu0 0.0
      %1674 = vmatpush1.msra.mxu0 0.0
      %1675 = vmatprep.subr.mxu0 0.0
      %1676 = vmatpush1.msra.mxu0 0.0
      %1677 = vmatprep.subr.mxu0 0.0
      %1678 = vmatpush1.msra.mxu0 0.0
      %1679 = vmatprep.subr.mxu0 0.0
      %1680 = vmatpush1.msra.mxu0 0.0
      %1681 = vmatprep.subr.mxu0 0.0
      %1682 = vmatpush1.msra.mxu0 0.0
      %1683 = vmatprep.subr.mxu0 %v1649
      %1684 = vmatpush1.msra.mxu0 %v1647
      %1685 = vmatprep.subr.mxu0 0.0
      %1686 = vmatpush2.msra.mxu0 0.0
      %1687 = vmatprep.subr.mxu0 0.0
      %1688 = vmatpush2.msra.mxu0 0.0
      %1689 = vmatprep.subr.mxu0 0.0
      %1690 = vmatpush2.msra.mxu0 0.0
      %1691 = vmatprep.subr.mxu0 0.0
      %1692 = vmatpush2.msra.mxu0 0.0
      %1693 = vmatprep.subr.mxu0 0.0
      %1694 = vmatpush2.msra.mxu0 0.0
      %1695 = vmatprep.subr.mxu0 0.0
      %1696 = vmatpush2.msra.mxu0 0.0
      %1697 = vmatprep.subr.mxu0 0.0
      %1698 = vmatpush2.msra.mxu0 0.0
      %1699 = vmatprep.subr.mxu0 0.0
      %1700 = vmatpush2.msra.mxu0 0.0
      %1701 = vmatprep.subr.mxu0 0.0
      %1702 = vmatpush2.msra.mxu0 0.0
      %1703 = vmatprep.subr.mxu0 0.0
      %1704 = vmatpush2.msra.mxu0 0.0
      %1705 = vmatprep.subr.mxu0 0.0
      %1706 = vmatpush2.msra.mxu0 0.0
      %1707 = vmatprep.subr.mxu0 0.0
      %1708 = vmatpush2.msra.mxu0 0.0
      %1709 = vmatprep.subr.mxu0 0.0
      %1710 = vmatpush2.msra.mxu0 0.0
      %1711 = vmatprep.subr.mxu0 0.0
      %1712 = vmatpush2.msra.mxu0 0.0
      %1713 = vmatprep.subr.mxu0 0.0
      %1714 = vmatpush2.msra.mxu0 0.0
      %1715 = vmatprep.subr.mxu0 0.0
      %1716 = vmatpush2.msra.mxu0 0.0
      %1717 = vmatprep.mubr.f32.mxu0 0.0
      %1718 = vmatmul.mubr.f32.gmra.mxu0 %v1645
      %v1719 = vpop.f32.mrf.mxu0
      %v1720 = vadd.f32 0.0, %v1719
      %v1721 = vpop.f32.mrf.mxu0
      %v1722 = vadd.f32 0.0, %v1721
      %1723 = vdwg.mxu0
      %1724 = vmatprep.subr.mxu0 0.0
      %1725 = vmatpush1.msra.mxu0 0.0
      %1726 = vmatprep.subr.mxu0 0.0
      %1727 = vmatpush1.msra.mxu0 0.0
      %1728 = vmatprep.subr.mxu0 0.0
      %1729 = vmatpush1.msra.mxu0 0.0
      %1730 = vmatprep.subr.mxu0 0.0
      %1731 = vmatpush1.msra.mxu0 0.0
      %1732 = vmatprep.subr.mxu0 0.0
      %1733 = vmatpush1.msra.mxu0 0.0
      %1734 = vmatprep.subr.mxu0 0.0
      %1735 = vmatpush1.msra.mxu0 0.0
      %1736 = vmatprep.subr.mxu0 0.0
      %1737 = vmatpush1.msra.mxu0 0.0
      %1738 = vmatprep.subr.mxu0 0.0
      %1739 = vmatpush1.msra.mxu0 0.0
      %1740 = vmatprep.subr.mxu0 0.0
      %1741 = vmatpush1.msra.mxu0 0.0
      %1742 = vmatprep.subr.mxu0 0.0
      %1743 = vmatpush1.msra.mxu0 0.0
      %1744 = vmatprep.subr.mxu0 0.0
      %1745 = vmatpush1.msra.mxu0 0.0
      %1746 = vmatprep.subr.mxu0 0.0
      %1747 = vmatpush1.msra.mxu0 0.0
      %1748 = vmatprep.subr.mxu0 0.0
      %1749 = vmatpush1.msra.mxu0 0.0
      %1750 = vmatprep.subr.mxu0 0.0
      %1751 = vmatpush1.msra.mxu0 0.0
      %1752 = vmatprep.subr.mxu0 0.0
      %1753 = vmatpush1.msra.mxu0 0.0
      %1754 = vmatprep.subr.mxu0 0.0
      %1755 = vmatpush1.msra.mxu0 %v1651
      %1756 = vmatprep.subr.mxu0 0.0
      %1757 = vmatpush2.msra.mxu0 0.0
      %1758 = vmatprep.subr.mxu0 0.0
      %1759 = vmatpush2.msra.mxu0 0.0
      %1760 = vmatprep.subr.mxu0 0.0
      %1761 = vmatpush2.msra.mxu0 0.0
      %1762 = vmatprep.subr.mxu0 0.0
      %1763 = vmatpush2.msra.mxu0 0.0
      %1764 = vmatprep.subr.mxu0 0.0
      %1765 = vmatpush2.msra.mxu0 0.0
      %1766 = vmatprep.subr.mxu0 0.0
      %1767 = vmatpush2.msra.mxu0 0.0
      %1768 = vmatprep.subr.mxu0 0.0
      %1769 = vmatpush2.msra.mxu0 0.0
      %1770 = vmatprep.subr.mxu0 0.0
      %1771 = vmatpush2.msra.mxu0 0.0
      %1772 = vmatprep.subr.mxu0 0.0
      %1773 = vmatpush2.msra.mxu0 0.0
      %1774 = vmatprep.subr.mxu0 0.0
      %1775 = vmatpush2.msra.mxu0 0.0
      %1776 = vmatprep.subr.mxu0 0.0
      %1777 = vmatpush2.msra.mxu0 0.0
      %1778 = vmatprep.subr.mxu0 0.0
      %1779 = vmatpush2.msra.mxu0 0.0
      %1780 = vmatprep.subr.mxu0 0.0
      %1781 = vmatpush2.msra.mxu0 0.0
      %1782 = vmatprep.subr.mxu0 0.0
      %1783 = vmatpush2.msra.mxu0 0.0
      %1784 = vmatprep.subr.mxu0 0.0
      %1785 = vmatpush2.msra.mxu0 0.0
      %1786 = vmatprep.subr.mxu0 0.0
      %1787 = vmatpush2.msra.mxu0 0.0
      %1788 = vmatprep.mubr.f32.mxu0 0.0
      %1789 = vmatmul.mubr.f32.gmra.mxu0 %v1645
      %v1790 = vpop.f32.mrf.mxu0
      %v1791 = vadd.f32 0.0, %v1790
      %v1792 = vpop.f32.mrf.mxu0
      %1793 = vdwg.mxu0
      %v1794 = vadd.f32 %v1621, %v1720
      %v1795 = vadd.f32 %v1622, %v1722
      %v1796 = vadd.f32 %v1623, %v1791
      %1797 = vst [vmem:[%s251] sm:$0xff] %v1794
      %1798 = vst [vmem:[%s251 + $0x8] sm:$0xff] %v1795
      %1799 = vst [vmem:[%s251 + $0x10] sm:$0xff] %v1796
      %s1800 = smul.u32 3, %s19
      %p1801 = scmp.lt.s32.totalorder %s18, 1
      %s1802 = scalar_select %p1801, %s18, 1
      %p1803 = scmp.lt.s32.totalorder %s1800, 2
      %s1804 = scalar_select %p1803, %s1800, 2
      %s1805 = smul.addr %s1802, 3
      %s1806 = sadd.s32 %s1804, %s1805
      %s1807 = smul.addr %s1806, 8
      %s1808 = scalar_lea.vmem %s3, %s1807
      // Predicated region
      $region33: #{conv2d_pallas.1} parent=31 // pred_check
        %p1809 = pneg %p125
      $region34: #{conv2d_pallas.1} parent=31 // pred_check_branch
        %1811 = sbr.rel (%p1809) target = $region36
      $region35: #{conv2d_pallas.1} parent=31 // pred_region
        %s1812 = smul.u32 3, %s19
      $region36: #{conv2d_pallas.1} parent=31 // pred_fallthru
        _
    $region32: #{conv2d_pallas.1} parent=5 // pred_fallthru
      _
    %p1813 = scmp.le.s32.totalorder 2, %s9
    // Predicated region
    $region37: #{conv2d_pallas.1} parent=5 // pred_check
      %p1814 = pneg %p1813
    $region38: #{conv2d_pallas.1} parent=5 // pred_check_branch
      %1816 = sbr.rel (%p1814) target = $region40
    $region39: #{conv2d_pallas.1} parent=5 // pred_region
      %s1817 = ssub.s32 %s9, 2
      // Predicated region
      $region41: #{conv2d_pallas.1} parent=39 // pred_check
        %p1818 = pneg %p131
      $region42: #{conv2d_pallas.1} parent=39 // pred_check_branch
        %1820 = sbr.rel (%p1818) target = $region44
      $region43: #{conv2d_pallas.1} parent=39 // pred_region
        %s1821 = smul.u32 3, %s21
        %p1822 = scmp.lt.s32.totalorder %s20, 1
        %s1823 = scalar_select %p1822, %s20, 1
        %p1824 = scmp.lt.s32.totalorder %s1821, 2
        %s1825 = scalar_select %p1824, %s1821, 2
        %s1826 = smul.addr %s1823, 3
        %s1827 = sadd.s32 %s1825, %s1826
        %s1828 = smul.addr %s1827, 8
        %s1829 = scalar_lea.vmem %s3, %s1828
      $region44: #{conv2d_pallas.1} parent=39 // pred_fallthru
        _
    $region40: #{conv2d_pallas.1} parent=5 // pred_fallthru
      _
  $region6: #{conv2d_pallas.1} parent=0 // loop_footer
    %s13 = sadd.s32 1, %s9
  $region7: #{conv2d_pallas.1} parent=0 // loop_footer_branch
    %8 = sbr.rel target = $region3
  $region8: #{conv2d_pallas.1} parent=0 // loop_exit
    _

</llo_original>
